<compile_context>
chip_gen: v7x
topology: tpu7x:2x2x1
jax: 0.10.0
libtpu: 0.0.40
codegen_flags: <defaults>
</compile_context>

<pallas_src>
import functools

import jax
import jax.numpy as jnp
from jax import lax
from jax.experimental import pallas as pl
from jax.experimental.pallas import tpu as pltpu  # noqa: F401  (kept for TPU backend selection clarity)

block_size = 8   # T
n_embd = 32      # C
num_heads = 4    # H
head_size = 8    # D  (H * D == n_embd, like the original model)


def _mha_fused_kernel(x_ref, w_ref, o_ref, *, batch, seq, nheads, hdim):
    """Single invocation: all batches + all heads in one body (pure 2-D ops)."""
    B, T, H, D = batch, seq, nheads, hdim
    HD = H * D

    x = x_ref[...]          # (B*T, C)
    w = w_ref[...]          # (C, 3*H*D) : columns = [q heads | k heads | v heads]

    # One MXU matmul for every batch row and every head's q/k/v projection.
    qkv = jnp.dot(x, w, preferred_element_type=jnp.float32)      # (B*T, 3*H*D)

    # Causal (lower-triangular) mask built in-kernel: two iotas + compare (VPU).
    row = lax.broadcasted_iota(jnp.int32, (T, T), 0)
    col = lax.broadcasted_iota(jnp.int32, (T, T), 1)
    keep = row >= col
    neg = jnp.float32(-1e30)   # large finite negative: exp() -> 0 exactly, no NaN risk

    # Attention per (batch, head): statically unrolled (B*H = 8 tiny 2-D steps).
    for b in range(B):
        r = b * T
        for h in range(H):
            q = qkv[r:r + T, h * D:(h + 1) * D]                          # (T, D)
            k = qkv[r:r + T, HD + h * D:HD + (h + 1) * D]                # (T, D)
            v = qkv[r:r + T, 2 * HD + h * D:2 * HD + (h + 1) * D]        # (T, D)

            # q @ k^T without materializing a transpose: contract last dims.
            wei = lax.dot_general(q, k, (((1,), (1,)), ((), ())),
                                  preferred_element_type=jnp.float32)    # (T, T)

            # causal mask + numerically-stable, exact softmax
            wei = jnp.where(keep, wei, neg)
            wei = wei - jnp.max(wei, axis=-1, keepdims=True)
            p = jnp.exp(wei)
            p = p / jnp.sum(p, axis=-1, keepdims=True)

            ho = jnp.dot(p, v, preferred_element_type=jnp.float32)       # (T, D)
            # Store this head's result directly into its destination lanes.
            o_ref[r:r + T, h * D:(h + 1) * D] = ho.astype(o_ref.dtype)


def fuse_head_weights(wk, wq, wv):
    """One-off (init-time) fusion of per-head weights into a (C, 3*H*D) matrix.

    Column layout: [q_h0..q_h{H-1} | k_h0.. | v_h0..], each head D columns wide.
    Hoisted out of the per-call hot path per the perf review.
    """
    H, C, D = wq.shape
    HD = H * D
    w_q = jnp.transpose(wq, (1, 0, 2)).reshape(C, HD)
    w_k = jnp.transpose(wk, (1, 0, 2)).reshape(C, HD)
    w_v = jnp.transpose(wv, (1, 0, 2)).reshape(C, HD)
    return jnp.concatenate([w_q, w_k, w_v], axis=1)       # (C, 3*H*D)


@functools.partial(jax.jit, static_argnames=("nheads", "hdim"))
def multi_head_attention(x, w_fused, *, nheads=num_heads, hdim=head_size):
    """
    x       : (B, T, C) float32
    w_fused : (C, 3*H*D) float32  (from fuse_head_weights, built once at init)
    returns (B, T, H*D) float32
    """
    B, T, C = x.shape
    H, D = nheads, hdim
    HD = H * D

    kernel = functools.partial(_mha_fused_kernel, batch=B, seq=T, nheads=H, hdim=D)

    # No grid: whole (tiny) operands live in VMEM for a single kernel invocation.
    out2 = pl.pallas_call(
        kernel,
        out_shape=jax.ShapeDtypeStruct((B * T, HD), x.dtype),
    )(x.reshape(B * T, C), w_fused)

    return out2.reshape(B, T, HD)   # free, contiguous reshape in XLA


def _reference(x, wk, wq, wv):
    """Pure-JAX reference for a correctness sanity check."""
    hp = lax.Precision.HIGHEST
    k = jnp.einsum("btc,hcd->bhtd", x, wk, precision=hp)
    q = jnp.einsum("btc,hcd->bhtd", x, wq, precision=hp)
    v = jnp.einsum("btc,hcd->bhtd", x, wv, precision=hp)
    wei = jnp.einsum("bhqd,bhkd->bhqk", q, k, precision=hp)
    T = x.shape[1]
    mask = jnp.tril(jnp.ones((T, T), dtype=bool))
    wei = jnp.where(mask, wei, -jnp.inf)
    wei = jax.nn.softmax(wei, axis=-1)
    out = jnp.einsum("bhqk,bhkd->bhqd", wei, v, precision=hp)
    B, H, _, D = out.shape
    return jnp.transpose(out, (0, 2, 1, 3)).reshape(B, T, H * D)


if __name__ == "__main__":
    key = jax.random.PRNGKey(0)
    kx, kk, kq, kv = jax.random.split(key, 4)

    B, T, C, H, D = 2, block_size, n_embd, num_heads, head_size

    x = jax.random.normal(kx, (B, T, C), dtype=jnp.float32)
    # nn.Linear(C, D, bias=False) default init: U(-1/sqrt(C), 1/sqrt(C)); stored as (C, D)
    bound = 1.0 / jnp.sqrt(jnp.float32(C))
    wk = jax.random.uniform(kk, (H, C, D), jnp.float32, -bound, bound)
    wq = jax.random.uniform(kq, (H, C, D), jnp.float32, -bound, bound)
    wv = jax.random.uniform(kv, (H, C, D), jnp.float32, -bound, bound)

    # Init-time weight fusion (NOT in the per-call hot path).
    w_fused = jax.block_until_ready(fuse_head_weights(wk, wq, wv))

    out = multi_head_attention(x, w_fused, nheads=H, hdim=D)
    out = jax.block_until_ready(out)

    ref = _reference(x, wk, wq, wv)
    assert out.shape == (B, T, H * D), out.shape
    # Exact softmax + f32 MXU accumulation: only tiny fp-association differences remain.
    assert jnp.allclose(out, ref, atol=1e-4, rtol=1e-4), float(
        jnp.max(jnp.abs(out - ref))
    )

    print("KERNEL_OK")
</pallas_src>

<mosaic_0001>
module attributes {stable_mosaic.version = 11 : i64} {
  func.func @_mha_fused_kernel(%arg0: memref<16x32xf32, #tpu.memory_space<vmem>>, %arg1: memref<32x96xf32, #tpu.memory_space<vmem>>, %arg2: memref<16x32xf32, #tpu.memory_space<vmem>>) attributes {dimension_semantics = [], scalar_prefetch = 0 : i64, scratch_operands = 0 : i64, tpu.core_type = #tpu.core_type<tc>} {
    %c0 = arith.constant 0 : index
    %c0_0 = arith.constant 0 : index
    %0 = vector.load %arg0[%c0, %c0_0] : memref<16x32xf32, #tpu.memory_space<vmem>>, vector<16x32xf32>
    %c0_1 = arith.constant 0 : index
    %c0_2 = arith.constant 0 : index
    %1 = vector.load %arg1[%c0_1, %c0_2] : memref<32x96xf32, #tpu.memory_space<vmem>>, vector<32x96xf32>
    %cst = arith.constant dense<0.000000e+00> : vector<16x96xf32>
    %2 = tpu.matmul %0, %1, %cst {dimension_numbers = #tpu.dot_dimension_numbers<[1], [0], [0], [1], [0, 0, 1, 1], [], []>} : vector<16x32xf32>, vector<32x96xf32>, vector<16x96xf32> -> vector<16x96xf32>
    %3 = tpu.iota {dimensions = array<i32: 0>} : vector<8x8xi32>
    %4 = tpu.iota {dimensions = array<i32: 1>} : vector<8x8xi32>
    %5 = arith.cmpi sge, %3, %4 : vector<8x8xi32>
    %6 = vector.extract_strided_slice %2 {offsets = [0, 0], sizes = [8, 8], strides = [1, 1]} : vector<16x96xf32> to vector<8x8xf32>
    %7 = vector.extract_strided_slice %2 {offsets = [0, 32], sizes = [8, 8], strides = [1, 1]} : vector<16x96xf32> to vector<8x8xf32>
    %8 = vector.extract_strided_slice %2 {offsets = [0, 64], sizes = [8, 8], strides = [1, 1]} : vector<16x96xf32> to vector<8x8xf32>
    %cst_3 = arith.constant dense<0.000000e+00> : vector<8x8xf32>
    %9 = tpu.matmul %6, %7, %cst_3 {dimension_numbers = #tpu.dot_dimension_numbers<[1], [1], [0], [0], [0, 0, 1, 0], [], []>} : vector<8x8xf32>, vector<8x8xf32>, vector<8x8xf32> -> vector<8x8xf32>
    %cst_4 = arith.constant -1.000000e+30 : f32
    %10 = vector.broadcast %cst_4 : f32 to vector<8x8xf32>
    %11 = arith.select %5, %9, %10 : vector<8x8xi1>, vector<8x8xf32>
    %cst_5 = arith.constant dense<0xFF800000> : vector<8xf32>
    %12 = vector.multi_reduction <maximumf>, %11, %cst_5 [1] : vector<8x8xf32> to vector<8xf32>
    %13 = vector.shape_cast %12 : vector<8xf32> to vector<8x1xf32>
    %14 = vector.broadcast %13 : vector<8x1xf32> to vector<8x8xf32>
    %15 = arith.subf %11, %14 : vector<8x8xf32>
    %16 = math.exp %15 : vector<8x8xf32>
    %cst_6 = arith.constant dense<0.000000e+00> : vector<8xf32>
    %17 = vector.multi_reduction <add>, %16, %cst_6 [1] : vector<8x8xf32> to vector<8xf32>
    %18 = vector.shape_cast %17 : vector<8xf32> to vector<8x1xf32>
    %19 = vector.broadcast %18 : vector<8x1xf32> to vector<8x8xf32>
    %20 = arith.divf %16, %19 : vector<8x8xf32>
    %cst_7 = arith.constant dense<0.000000e+00> : vector<8x8xf32>
    %21 = tpu.matmul %20, %8, %cst_7 {dimension_numbers = #tpu.dot_dimension_numbers<[1], [0], [0], [1], [0, 0, 1, 1], [], []>} : vector<8x8xf32>, vector<8x8xf32>, vector<8x8xf32> -> vector<8x8xf32>
    %c0_8 = arith.constant 0 : index
    %c0_9 = arith.constant 0 : index
    %22 = vector.load %arg2[%c0_8, %c0_9] : memref<16x32xf32, #tpu.memory_space<vmem>>, vector<8x8xf32>
    tpu.vector_store %arg2[%c0_8, %c0_9], %21 {strides = array<i32>} : memref<16x32xf32, #tpu.memory_space<vmem>>, vector<8x8xf32>,
    %23 = vector.extract_strided_slice %2 {offsets = [0, 8], sizes = [8, 8], strides = [1, 1]} : vector<16x96xf32> to vector<8x8xf32>
    %24 = vector.extract_strided_slice %2 {offsets = [0, 40], sizes = [8, 8], strides = [1, 1]} : vector<16x96xf32> to vector<8x8xf32>
    %25 = vector.extract_strided_slice %2 {offsets = [0, 72], sizes = [8, 8], strides = [1, 1]} : vector<16x96xf32> to vector<8x8xf32>
    %cst_10 = arith.constant dense<0.000000e+00> : vector<8x8xf32>
    %26 = tpu.matmul %23, %24, %cst_10 {dimension_numbers = #tpu.dot_dimension_numbers<[1], [1], [0], [0], [0, 0, 1, 0], [], []>} : vector<8x8xf32>, vector<8x8xf32>, vector<8x8xf32> -> vector<8x8xf32>
    %cst_11 = arith.constant -1.000000e+30 : f32
    %27 = vector.broadcast %cst_11 : f32 to vector<8x8xf32>
    %28 = arith.select %5, %26, %27 : vector<8x8xi1>, vector<8x8xf32>
    %cst_12 = arith.constant dense<0xFF800000> : vector<8xf32>
    %29 = vector.multi_reduction <maximumf>, %28, %cst_12 [1] : vector<8x8xf32> to vector<8xf32>
    %30 = vector.shape_cast %29 : vector<8xf32> to vector<8x1xf32>
    %31 = vector.broadcast %30 : vector<8x1xf32> to vector<8x8xf32>
    %32 = arith.subf %28, %31 : vector<8x8xf32>
    %33 = math.exp %32 : vector<8x8xf32>
    %cst_13 = arith.constant dense<0.000000e+00> : vector<8xf32>
    %34 = vector.multi_reduction <add>, %33, %cst_13 [1] : vector<8x8xf32> to vector<8xf32>
    %35 = vector.shape_cast %34 : vector<8xf32> to vector<8x1xf32>
    %36 = vector.broadcast %35 : vector<8x1xf32> to vector<8x8xf32>
    %37 = arith.divf %33, %36 : vector<8x8xf32>
    %cst_14 = arith.constant dense<0.000000e+00> : vector<8x8xf32>
    %38 = tpu.matmul %37, %25, %cst_14 {dimension_numbers = #tpu.dot_dimension_numbers<[1], [0], [0], [1], [0, 0, 1, 1], [], []>} : vector<8x8xf32>, vector<8x8xf32>, vector<8x8xf32> -> vector<8x8xf32>
    %c0_15 = arith.constant 0 : index
    %c8 = arith.constant 8 : index
    %39 = vector.load %arg2[%c0_15, %c8] : memref<16x32xf32, #tpu.memory_space<vmem>>, vector<8x8xf32>
    tpu.vector_store %arg2[%c0_15, %c8], %38 {strides = array<i32>} : memref<16x32xf32, #tpu.memory_space<vmem>>, vector<8x8xf32>,
    %40 = vector.extract_strided_slice %2 {offsets = [0, 16], sizes = [8, 8], strides = [1, 1]} : vector<16x96xf32> to vector<8x8xf32>
    %41 = vector.extract_strided_slice %2 {offsets = [0, 48], sizes = [8, 8], strides = [1, 1]} : vector<16x96xf32> to vector<8x8xf32>
    %42 = vector.extract_strided_slice %2 {offsets = [0, 80], sizes = [8, 8], strides = [1, 1]} : vector<16x96xf32> to vector<8x8xf32>
    %cst_16 = arith.constant dense<0.000000e+00> : vector<8x8xf32>
    %43 = tpu.matmul %40, %41, %cst_16 {dimension_numbers = #tpu.dot_dimension_numbers<[1], [1], [0], [0], [0, 0, 1, 0], [], []>} : vector<8x8xf32>, vector<8x8xf32>, vector<8x8xf32> -> vector<8x8xf32>
    %cst_17 = arith.constant -1.000000e+30 : f32
    %44 = vector.broadcast %cst_17 : f32 to vector<8x8xf32>
    %45 = arith.select %5, %43, %44 : vector<8x8xi1>, vector<8x8xf32>
    %cst_18 = arith.constant dense<0xFF800000> : vector<8xf32>
    %46 = vector.multi_reduction <maximumf>, %45, %cst_18 [1] : vector<8x8xf32> to vector<8xf32>
    %47 = vector.shape_cast %46 : vector<8xf32> to vector<8x1xf32>
    %48 = vector.broadcast %47 : vector<8x1xf32> to vector<8x8xf32>
    %49 = arith.subf %45, %48 : vector<8x8xf32>
    %50 = math.exp %49 : vector<8x8xf32>
    %cst_19 = arith.constant dense<0.000000e+00> : vector<8xf32>
    %51 = vector.multi_reduction <add>, %50, %cst_19 [1] : vector<8x8xf32> to vector<8xf32>
    %52 = vector.shape_cast %51 : vector<8xf32> to vector<8x1xf32>
    %53 = vector.broadcast %52 : vector<8x1xf32> to vector<8x8xf32>
    %54 = arith.divf %50, %53 : vector<8x8xf32>
    %cst_20 = arith.constant dense<0.000000e+00> : vector<8x8xf32>
    %55 = tpu.matmul %54, %42, %cst_20 {dimension_numbers = #tpu.dot_dimension_numbers<[1], [0], [0], [1], [0, 0, 1, 1], [], []>} : vector<8x8xf32>, vector<8x8xf32>, vector<8x8xf32> -> vector<8x8xf32>
    %c0_21 = arith.constant 0 : index
    %c16 = arith.constant 16 : index
    %56 = vector.load %arg2[%c0_21, %c16] : memref<16x32xf32, #tpu.memory_space<vmem>>, vector<8x8xf32>
    tpu.vector_store %arg2[%c0_21, %c16], %55 {strides = array<i32>} : memref<16x32xf32, #tpu.memory_space<vmem>>, vector<8x8xf32>,
    %57 = vector.extract_strided_slice %2 {offsets = [0, 24], sizes = [8, 8], strides = [1, 1]} : vector<16x96xf32> to vector<8x8xf32>
    %58 = vector.extract_strided_slice %2 {offsets = [0, 56], sizes = [8, 8], strides = [1, 1]} : vector<16x96xf32> to vector<8x8xf32>
    %59 = vector.extract_strided_slice %2 {offsets = [0, 88], sizes = [8, 8], strides = [1, 1]} : vector<16x96xf32> to vector<8x8xf32>
    %cst_22 = arith.constant dense<0.000000e+00> : vector<8x8xf32>
    %60 = tpu.matmul %57, %58, %cst_22 {dimension_numbers = #tpu.dot_dimension_numbers<[1], [1], [0], [0], [0, 0, 1, 0], [], []>} : vector<8x8xf32>, vector<8x8xf32>, vector<8x8xf32> -> vector<8x8xf32>
    %cst_23 = arith.constant -1.000000e+30 : f32
    %61 = vector.broadcast %cst_23 : f32 to vector<8x8xf32>
    %62 = arith.select %5, %60, %61 : vector<8x8xi1>, vector<8x8xf32>
    %cst_24 = arith.constant dense<0xFF800000> : vector<8xf32>
    %63 = vector.multi_reduction <maximumf>, %62, %cst_24 [1] : vector<8x8xf32> to vector<8xf32>
    %64 = vector.shape_cast %63 : vector<8xf32> to vector<8x1xf32>
    %65 = vector.broadcast %64 : vector<8x1xf32> to vector<8x8xf32>
    %66 = arith.subf %62, %65 : vector<8x8xf32>
    %67 = math.exp %66 : vector<8x8xf32>
    %cst_25 = arith.constant dense<0.000000e+00> : vector<8xf32>
    %68 = vector.multi_reduction <add>, %67, %cst_25 [1] : vector<8x8xf32> to vector<8xf32>
    %69 = vector.shape_cast %68 : vector<8xf32> to vector<8x1xf32>
    %70 = vector.broadcast %69 : vector<8x1xf32> to vector<8x8xf32>
    %71 = arith.divf %67, %70 : vector<8x8xf32>
    %cst_26 = arith.constant dense<0.000000e+00> : vector<8x8xf32>
    %72 = tpu.matmul %71, %59, %cst_26 {dimension_numbers = #tpu.dot_dimension_numbers<[1], [0], [0], [1], [0, 0, 1, 1], [], []>} : vector<8x8xf32>, vector<8x8xf32>, vector<8x8xf32> -> vector<8x8xf32>
    %c0_27 = arith.constant 0 : index
    %c24 = arith.constant 24 : index
    %73 = vector.load %arg2[%c0_27, %c24] : memref<16x32xf32, #tpu.memory_space<vmem>>, vector<8x8xf32>
    tpu.vector_store %arg2[%c0_27, %c24], %72 {strides = array<i32>} : memref<16x32xf32, #tpu.memory_space<vmem>>, vector<8x8xf32>,
    %74 = vector.extract_strided_slice %2 {offsets = [8, 0], sizes = [8, 8], strides = [1, 1]} : vector<16x96xf32> to vector<8x8xf32>
    %75 = vector.extract_strided_slice %2 {offsets = [8, 32], sizes = [8, 8], strides = [1, 1]} : vector<16x96xf32> to vector<8x8xf32>
    %76 = vector.extract_strided_slice %2 {offsets = [8, 64], sizes = [8, 8], strides = [1, 1]} : vector<16x96xf32> to vector<8x8xf32>
    %cst_28 = arith.constant dense<0.000000e+00> : vector<8x8xf32>
    %77 = tpu.matmul %74, %75, %cst_28 {dimension_numbers = #tpu.dot_dimension_numbers<[1], [1], [0], [0], [0, 0, 1, 0], [], []>} : vector<8x8xf32>, vector<8x8xf32>, vector<8x8xf32> -> vector<8x8xf32>
    %cst_29 = arith.constant -1.000000e+30 : f32
    %78 = vector.broadcast %cst_29 : f32 to vector<8x8xf32>
    %79 = arith.select %5, %77, %78 : vector<8x8xi1>, vector<8x8xf32>
    %cst_30 = arith.constant dense<0xFF800000> : vector<8xf32>
    %80 = vector.multi_reduction <maximumf>, %79, %cst_30 [1] : vector<8x8xf32> to vector<8xf32>
    %81 = vector.shape_cast %80 : vector<8xf32> to vector<8x1xf32>
    %82 = vector.broadcast %81 : vector<8x1xf32> to vector<8x8xf32>
    %83 = arith.subf %79, %82 : vector<8x8xf32>
    %84 = math.exp %83 : vector<8x8xf32>
    %cst_31 = arith.constant dense<0.000000e+00> : vector<8xf32>
    %85 = vector.multi_reduction <add>, %84, %cst_31 [1] : vector<8x8xf32> to vector<8xf32>
    %86 = vector.shape_cast %85 : vector<8xf32> to vector<8x1xf32>
    %87 = vector.broadcast %86 : vector<8x1xf32> to vector<8x8xf32>
    %88 = arith.divf %84, %87 : vector<8x8xf32>
    %cst_32 = arith.constant dense<0.000000e+00> : vector<8x8xf32>
    %89 = tpu.matmul %88, %76, %cst_32 {dimension_numbers = #tpu.dot_dimension_numbers<[1], [0], [0], [1], [0, 0, 1, 1], [], []>} : vector<8x8xf32>, vector<8x8xf32>, vector<8x8xf32> -> vector<8x8xf32>
    %c8_33 = arith.constant 8 : index
    %c0_34 = arith.constant 0 : index
    %90 = vector.load %arg2[%c8_33, %c0_34] : memref<16x32xf32, #tpu.memory_space<vmem>>, vector<8x8xf32>
    tpu.vector_store %arg2[%c8_33, %c0_34], %89 {strides = array<i32>} : memref<16x32xf32, #tpu.memory_space<vmem>>, vector<8x8xf32>,
    %91 = vector.extract_strided_slice %2 {offsets = [8, 8], sizes = [8, 8], strides = [1, 1]} : vector<16x96xf32> to vector<8x8xf32>
    %92 = vector.extract_strided_slice %2 {offsets = [8, 40], sizes = [8, 8], strides = [1, 1]} : vector<16x96xf32> to vector<8x8xf32>
    %93 = vector.extract_strided_slice %2 {offsets = [8, 72], sizes = [8, 8], strides = [1, 1]} : vector<16x96xf32> to vector<8x8xf32>
    %cst_35 = arith.constant dense<0.000000e+00> : vector<8x8xf32>
    %94 = tpu.matmul %91, %92, %cst_35 {dimension_numbers = #tpu.dot_dimension_numbers<[1], [1], [0], [0], [0, 0, 1, 0], [], []>} : vector<8x8xf32>, vector<8x8xf32>, vector<8x8xf32> -> vector<8x8xf32>
    %cst_36 = arith.constant -1.000000e+30 : f32
    %95 = vector.broadcast %cst_36 : f32 to vector<8x8xf32>
    %96 = arith.select %5, %94, %95 : vector<8x8xi1>, vector<8x8xf32>
    %cst_37 = arith.constant dense<0xFF800000> : vector<8xf32>
    %97 = vector.multi_reduction <maximumf>, %96, %cst_37 [1] : vector<8x8xf32> to vector<8xf32>
    %98 = vector.shape_cast %97 : vector<8xf32> to vector<8x1xf32>
    %99 = vector.broadcast %98 : vector<8x1xf32> to vector<8x8xf32>
    %100 = arith.subf %96, %99 : vector<8x8xf32>
    %101 = math.exp %100 : vector<8x8xf32>
    %cst_38 = arith.constant dense<0.000000e+00> : vector<8xf32>
    %102 = vector.multi_reduction <add>, %101, %cst_38 [1] : vector<8x8xf32> to vector<8xf32>
    %103 = vector.shape_cast %102 : vector<8xf32> to vector<8x1xf32>
    %104 = vector.broadcast %103 : vector<8x1xf32> to vector<8x8xf32>
    %105 = arith.divf %101, %104 : vector<8x8xf32>
    %cst_39 = arith.constant dense<0.000000e+00> : vector<8x8xf32>
    %106 = tpu.matmul %105, %93, %cst_39 {dimension_numbers = #tpu.dot_dimension_numbers<[1], [0], [0], [1], [0, 0, 1, 1], [], []>} : vector<8x8xf32>, vector<8x8xf32>, vector<8x8xf32> -> vector<8x8xf32>
    %c8_40 = arith.constant 8 : index
    %c8_41 = arith.constant 8 : index
    %107 = vector.load %arg2[%c8_40, %c8_41] : memref<16x32xf32, #tpu.memory_space<vmem>>, vector<8x8xf32>
    tpu.vector_store %arg2[%c8_40, %c8_41], %106 {strides = array<i32>} : memref<16x32xf32, #tpu.memory_space<vmem>>, vector<8x8xf32>,
    %108 = vector.extract_strided_slice %2 {offsets = [8, 16], sizes = [8, 8], strides = [1, 1]} : vector<16x96xf32> to vector<8x8xf32>
    %109 = vector.extract_strided_slice %2 {offsets = [8, 48], sizes = [8, 8], strides = [1, 1]} : vector<16x96xf32> to vector<8x8xf32>
    %110 = vector.extract_strided_slice %2 {offsets = [8, 80], sizes = [8, 8], strides = [1, 1]} : vector<16x96xf32> to vector<8x8xf32>
    %cst_42 = arith.constant dense<0.000000e+00> : vector<8x8xf32>
    %111 = tpu.matmul %108, %109, %cst_42 {dimension_numbers = #tpu.dot_dimension_numbers<[1], [1], [0], [0], [0, 0, 1, 0], [], []>} : vector<8x8xf32>, vector<8x8xf32>, vector<8x8xf32> -> vector<8x8xf32>
    %cst_43 = arith.constant -1.000000e+30 : f32
    %112 = vector.broadcast %cst_43 : f32 to vector<8x8xf32>
    %113 = arith.select %5, %111, %112 : vector<8x8xi1>, vector<8x8xf32>
    %cst_44 = arith.constant dense<0xFF800000> : vector<8xf32>
    %114 = vector.multi_reduction <maximumf>, %113, %cst_44 [1] : vector<8x8xf32> to vector<8xf32>
    %115 = vector.shape_cast %114 : vector<8xf32> to vector<8x1xf32>
    %116 = vector.broadcast %115 : vector<8x1xf32> to vector<8x8xf32>
    %117 = arith.subf %113, %116 : vector<8x8xf32>
    %118 = math.exp %117 : vector<8x8xf32>
    %cst_45 = arith.constant dense<0.000000e+00> : vector<8xf32>
    %119 = vector.multi_reduction <add>, %118, %cst_45 [1] : vector<8x8xf32> to vector<8xf32>
    %120 = vector.shape_cast %119 : vector<8xf32> to vector<8x1xf32>
    %121 = vector.broadcast %120 : vector<8x1xf32> to vector<8x8xf32>
    %122 = arith.divf %118, %121 : vector<8x8xf32>
    %cst_46 = arith.constant dense<0.000000e+00> : vector<8x8xf32>
    %123 = tpu.matmul %122, %110, %cst_46 {dimension_numbers = #tpu.dot_dimension_numbers<[1], [0], [0], [1], [0, 0, 1, 1], [], []>} : vector<8x8xf32>, vector<8x8xf32>, vector<8x8xf32> -> vector<8x8xf32>
    %c8_47 = arith.constant 8 : index
    %c16_48 = arith.constant 16 : index
    %124 = vector.load %arg2[%c8_47, %c16_48] : memref<16x32xf32, #tpu.memory_space<vmem>>, vector<8x8xf32>
    tpu.vector_store %arg2[%c8_47, %c16_48], %123 {strides = array<i32>} : memref<16x32xf32, #tpu.memory_space<vmem>>, vector<8x8xf32>,
    %125 = vector.extract_strided_slice %2 {offsets = [8, 24], sizes = [8, 8], strides = [1, 1]} : vector<16x96xf32> to vector<8x8xf32>
    %126 = vector.extract_strided_slice %2 {offsets = [8, 56], sizes = [8, 8], strides = [1, 1]} : vector<16x96xf32> to vector<8x8xf32>
    %127 = vector.extract_strided_slice %2 {offsets = [8, 88], sizes = [8, 8], strides = [1, 1]} : vector<16x96xf32> to vector<8x8xf32>
    %cst_49 = arith.constant dense<0.000000e+00> : vector<8x8xf32>
    %128 = tpu.matmul %125, %126, %cst_49 {dimension_numbers = #tpu.dot_dimension_numbers<[1], [1], [0], [0], [0, 0, 1, 0], [], []>} : vector<8x8xf32>, vector<8x8xf32>, vector<8x8xf32> -> vector<8x8xf32>
    %cst_50 = arith.constant -1.000000e+30 : f32
    %129 = vector.broadcast %cst_50 : f32 to vector<8x8xf32>
    %130 = arith.select %5, %128, %129 : vector<8x8xi1>, vector<8x8xf32>
    %cst_51 = arith.constant dense<0xFF800000> : vector<8xf32>
    %131 = vector.multi_reduction <maximumf>, %130, %cst_51 [1] : vector<8x8xf32> to vector<8xf32>
    %132 = vector.shape_cast %131 : vector<8xf32> to vector<8x1xf32>
    %133 = vector.broadcast %132 : vector<8x1xf32> to vector<8x8xf32>
    %134 = arith.subf %130, %133 : vector<8x8xf32>
    %135 = math.exp %134 : vector<8x8xf32>
    %cst_52 = arith.constant dense<0.000000e+00> : vector<8xf32>
    %136 = vector.multi_reduction <add>, %135, %cst_52 [1] : vector<8x8xf32> to vector<8xf32>
    %137 = vector.shape_cast %136 : vector<8xf32> to vector<8x1xf32>
    %138 = vector.broadcast %137 : vector<8x1xf32> to vector<8x8xf32>
    %139 = arith.divf %135, %138 : vector<8x8xf32>
    %cst_53 = arith.constant dense<0.000000e+00> : vector<8x8xf32>
    %140 = tpu.matmul %139, %127, %cst_53 {dimension_numbers = #tpu.dot_dimension_numbers<[1], [0], [0], [1], [0, 0, 1, 1], [], []>} : vector<8x8xf32>, vector<8x8xf32>, vector<8x8xf32> -> vector<8x8xf32>
    %c8_54 = arith.constant 8 : index
    %c24_55 = arith.constant 24 : index
    %141 = vector.load %arg2[%c8_54, %c24_55] : memref<16x32xf32, #tpu.memory_space<vmem>>, vector<8x8xf32>
    tpu.vector_store %arg2[%c8_54, %c24_55], %140 {strides = array<i32>} : memref<16x32xf32, #tpu.memory_space<vmem>>, vector<8x8xf32>,
    return
  }
}

</mosaic_0001>

<llo_original>
// kernel: multi_head_attention.1
$region0: #{multi_head_attention.1}
  #allocation0 [shape = 'u32[]', space=smem, size = 0x4, offset = 0x4, fixed_abs, tag = 'smem constant byte address 0x4 - core index']
  #allocation1 [shape = 'u32[144,128]{1,0:T(1,128)}', space=vmem, size = 0x12000, scoped, tag = 'internal scratch']
  %s0 = inlined_call_operand.hbm [shape: f32[16,32], index: 0, kind: input, shape index: {}]
  %s1 = inlined_call_operand.hbm [shape: f32[32,96], index: 1, kind: input, shape index: {}]
  %s2 = inlined_call_operand.hbm [shape: f32[16,32], index: 2, kind: output, shape index: {}]
  %s3 = sld [smem:[#allocation0]]
  $region26: #{multi_head_attention.1} parent=0
    _
  %s5 = ssub.s32 1, %s3
  %s6 = scalar_select 0, %s5, %s3
  $region1: #{multi_head_attention.1} parent=0
    #allocation2 [shape = 'u8[8192]{0}', space=vmem, size = 0x2000, scoped, tag = 'input window, operand 0, single buffered']
    #allocation3 [shape = 's32[1]{0}', space=sflag, size = 0x4, scoped, tag = 'scoped memory for multi_head_attention.1']
    #allocation4 [shape = 's32[1]{0}', space=sflag, size = 0x4, scoped, tag = 'scoped memory for multi_head_attention.1']
    #allocation5 [shape = 'u8[16384]{0}', space=vmem, size = 0x4000, scoped, tag = 'input window, operand 1, single buffered']
    #allocation6 [shape = 's32[1]{0}', space=sflag, size = 0x4, scoped, tag = 'scoped memory for multi_head_attention.1']
    #allocation7 [shape = 'u8[8192]{0}', space=vmem, size = 0x2000, scoped, tag = 'output window, operand 0, single buffered']
    %7 = vsyncpa [#allocation3], 0
    %8 = vsyncpa [#allocation6], 0
    %9 = vsyncpa [#allocation4], 0
    // Predicated region
    $region2: #{multi_head_attention.1} parent=1 // pred_check
      _
    $region3: #{multi_head_attention.1} parent=1 // pred_check_branch
      %11 = sbr.rel (0) target = $region5
    $region4: #{multi_head_attention.1} parent=1 // pred_region
      %s13 = ssub.s32 256, 256
      %14 = vsyncadd [#allocation3], %s13
      %s15 = sshll.u32 [#allocation2], 4
      %s16 = int_to_ptr.vmem [resolvable:$true] %s15
      %21 = dma.hbm_to_vmem [thread:$0]  %s0, 256, %s16, [#allocation3], 128, 128, 8
    $region5: #{multi_head_attention.1} parent=1 // pred_fallthru
      _
    // Predicated region
    $region6: #{multi_head_attention.1} parent=1 // pred_check
      _
    $region7: #{multi_head_attention.1} parent=1 // pred_check_branch
      %23 = sbr.rel (0) target = $region9
    $region8: #{multi_head_attention.1} parent=1 // pred_region
      %s25 = ssub.s32 512, 512
      %26 = vsyncadd [#allocation6], %s25
      %s27 = sshll.u32 [#allocation5], 4
      %s28 = int_to_ptr.vmem [resolvable:$true] %s27
      %33 = dma.hbm_to_vmem [thread:$0]  %s1, 512, %s28, [#allocation6], 128, 128, 8
    $region9: #{multi_head_attention.1} parent=1 // pred_fallthru
      _
    // Predicated region
    $region10: #{multi_head_attention.1} parent=1 // pred_check
      _
    $region11: #{multi_head_attention.1} parent=1 // pred_check_branch
      %35 = sbr.rel (0) target = $region13
    $region12: #{multi_head_attention.1} parent=1 // pred_region
      %36 = dma.done [#allocation3], 256
    $region13: #{multi_head_attention.1} parent=1 // pred_fallthru
      _
    // Predicated region
    $region14: #{multi_head_attention.1} parent=1 // pred_check
      _
    $region15: #{multi_head_attention.1} parent=1 // pred_check_branch
      %38 = sbr.rel (0) target = $region17
    $region16: #{multi_head_attention.1} parent=1 // pred_region
      %39 = dma.done [#allocation6], 512
    $region17: #{multi_head_attention.1} parent=1 // pred_fallthru
      _
    %v40 = vld [vmem:[#allocation2] sm:$0xff]
    %v41 = vld [vmem:[#allocation2 + $0x8] sm:$0xff]
    %v42 = vld [vmem:[#allocation5] sm:$0xff]
    %v43 = vld [vmem:[#allocation5 + $0x8] sm:$0xff]
    %v44 = vld [vmem:[#allocation5 + $0x10] sm:$0xff]
    %v45 = vld [vmem:[#allocation5 + $0x18] sm:$0xff]
    %vm46 = vcmask 261120
    %v48 = vsel %vm46, %v40, 0
    %v51 = vsel %vm46, %v41, 0
    %53 = vmatprep.subr.mxu0 0.0
    %54 = vmatpush1.msra.mxu0 %v42
    %55 = vmatprep.subr.mxu0 0.0
    %56 = vmatpush1.msra.mxu0 %v43
    %57 = vmatprep.subr.mxu0 0.0
    %58 = vmatpush1.msra.mxu0 %v44
    %59 = vmatprep.subr.mxu0 0.0
    %60 = vmatpush1.msra.mxu0 %v45
    %61 = vmatprep.subr.mxu0 0.0
    %62 = vmatpush1.msra.mxu0 0.0
    %63 = vmatprep.subr.mxu0 0.0
    %64 = vmatpush1.msra.mxu0 0.0
    %65 = vmatprep.subr.mxu0 0.0
    %66 = vmatpush1.msra.mxu0 0.0
    %67 = vmatprep.subr.mxu0 0.0
    %68 = vmatpush1.msra.mxu0 0.0
    %69 = vmatprep.subr.mxu0 0.0
    %70 = vmatpush1.msra.mxu0 0.0
    %71 = vmatprep.subr.mxu0 0.0
    %72 = vmatpush1.msra.mxu0 0.0
    %73 = vmatprep.subr.mxu0 0.0
    %74 = vmatpush1.msra.mxu0 0.0
    %75 = vmatprep.subr.mxu0 0.0
    %76 = vmatpush1.msra.mxu0 0.0
    %77 = vmatprep.subr.mxu0 0.0
    %78 = vmatpush1.msra.mxu0 0.0
    %79 = vmatprep.subr.mxu0 0.0
    %80 = vmatpush1.msra.mxu0 0.0
    %81 = vmatprep.subr.mxu0 0.0
    %82 = vmatpush1.msra.mxu0 0.0
    %83 = vmatprep.subr.mxu0 0.0
    %84 = vmatpush1.msra.mxu0 0.0
    %85 = vmatprep.subr.mxu0 0.0
    %86 = vmatpush1.msra.mxu0 0.0
    %87 = vmatprep.subr.mxu0 0.0
    %88 = vmatpush1.msra.mxu0 0.0
    %89 = vmatprep.subr.mxu0 0.0
    %90 = vmatpush1.msra.mxu0 0.0
    %91 = vmatprep.subr.mxu0 0.0
    %92 = vmatpush1.msra.mxu0 0.0
    %93 = vmatprep.subr.mxu0 0.0
    %94 = vmatpush1.msra.mxu0 0.0
    %95 = vmatprep.subr.mxu0 0.0
    %96 = vmatpush1.msra.mxu0 0.0
    %97 = vmatprep.subr.mxu0 0.0
    %98 = vmatpush1.msra.mxu0 0.0
    %99 = vmatprep.subr.mxu0 0.0
    %100 = vmatpush1.msra.mxu0 0.0
    %101 = vmatprep.subr.mxu0 0.0
    %102 = vmatpush1.msra.mxu0 0.0
    %103 = vmatprep.subr.mxu0 0.0
    %104 = vmatpush1.msra.mxu0 0.0
    %105 = vmatprep.subr.mxu0 0.0
    %106 = vmatpush1.msra.mxu0 0.0
    %107 = vmatprep.subr.mxu0 0.0
    %108 = vmatpush1.msra.mxu0 0.0
    %109 = vmatprep.subr.mxu0 0.0
    %110 = vmatpush1.msra.mxu0 0.0
    %111 = vmatprep.subr.mxu0 0.0
    %112 = vmatpush1.msra.mxu0 0.0
    %113 = vmatprep.subr.mxu0 0.0
    %114 = vmatpush1.msra.mxu0 0.0
    %115 = vmatprep.subr.mxu0 0.0
    %116 = vmatpush1.msra.mxu0 0.0
    %117 = vmatprep.mubr.f32.mxu0 0.0
    %118 = vmatmul.mubr.f32.gmra.mrb[0].mxu0 %v48
    %v119 = vpop.f32.mrb[0].mxu0
    %v120 = vadd.f32 0.0, %v119
    %v121 = vpop.f32.mrb[0].mxu0
    %122 = vmatprep.mubr.f32.mxu0 0.0
    %123 = vmatmul.mubr.f32.gmra.mrb[0].mxu0 %v51
    %v124 = vpop.f32.mrb[0].mxu0
    %v125 = vadd.f32 0.0, %v124
    %v126 = vpop.f32.mrb[0].mxu0
    %127 = vdwg.mxu0
    %v128 = vlaneseq
    %v129 = vshrl.u32 %v128, 7
    %v130 = vlaneseq
    %v131 = vand.u32 %v130, 127
    %vm132 = vcmp.ge.s32.totalorder %v129, %v131
    %134 = vrot.lane.b32.xlu0 %v120, 96
    %v135 = vpop.permute.xlu0 %134
    %vm136 = vcmask 64512
    %v137 = vsel %vm136, %v120, 0
    %v139 = vsel %vm136, %v135, 0
    %141 = vmatprep.subr.mxu0 0.0
    %142 = vmatpush1.xpose.msra.mxu0 %v139
    %143 = vmatprep.subr.mxu0 0.0
    %144 = vmatpush1.xpose.msra.mxu0 0.0
    %145 = vmatprep.subr.mxu0 0.0
    %146 = vmatpush1.xpose.msra.mxu0 0.0
    %147 = vmatprep.subr.mxu0 0.0
    %148 = vmatpush1.xpose.msra.mxu0 0.0
    %149 = vmatprep.subr.mxu0 0.0
    %150 = vmatpush1.xpose.msra.mxu0 0.0
    %151 = vmatprep.subr.mxu0 0.0
    %152 = vmatpush1.xpose.msra.mxu0 0.0
    %153 = vmatprep.subr.mxu0 0.0
    %154 = vmatpush1.xpose.msra.mxu0 0.0
    %155 = vmatprep.subr.mxu0 0.0
    %156 = vmatpush1.xpose.msra.mxu0 0.0
    %157 = vmatprep.subr.mxu0 0.0
    %158 = vmatpush1.xpose.msra.mxu0 0.0
    %159 = vmatprep.subr.mxu0 0.0
    %160 = vmatpush1.xpose.msra.mxu0 0.0
    %161 = vmatprep.subr.mxu0 0.0
    %162 = vmatpush1.xpose.msra.mxu0 0.0
    %163 = vmatprep.subr.mxu0 0.0
    %164 = vmatpush1.xpose.msra.mxu0 0.0
    %165 = vmatprep.subr.mxu0 0.0
    %166 = vmatpush1.xpose.msra.mxu0 0.0
    %167 = vmatprep.subr.mxu0 0.0
    %168 = vmatpush1.xpose.msra.mxu0 0.0
    %169 = vmatprep.subr.mxu0 0.0
    %170 = vmatpush1.xpose.msra.mxu0 0.0
    %171 = vmatprep.subr.mxu0 0.0
    %172 = vmatpush1.xpose.msra.mxu0 0.0
    %173 = vmatprep.subr.mxu0 0.0
    %174 = vmatpush1.xpose.msra.mxu0 0.0
    %175 = vmatprep.subr.mxu0 0.0
    %176 = vmatpush1.xpose.msra.mxu0 0.0
    %177 = vmatprep.subr.mxu0 0.0
    %178 = vmatpush1.xpose.msra.mxu0 0.0
    %179 = vmatprep.subr.mxu0 0.0
    %180 = vmatpush1.xpose.msra.mxu0 0.0
    %181 = vmatprep.subr.mxu0 0.0
    %182 = vmatpush1.xpose.msra.mxu0 0.0
    %183 = vmatprep.subr.mxu0 0.0
    %184 = vmatpush1.xpose.msra.mxu0 0.0
    %185 = vmatprep.subr.mxu0 0.0
    %186 = vmatpush1.xpose.msra.mxu0 0.0
    %187 = vmatprep.subr.mxu0 0.0
    %188 = vmatpush1.xpose.msra.mxu0 0.0
    %189 = vmatprep.subr.mxu0 0.0
    %190 = vmatpush1.xpose.msra.mxu0 0.0
    %191 = vmatprep.subr.mxu0 0.0
    %192 = vmatpush1.xpose.msra.mxu0 0.0
    %193 = vmatprep.subr.mxu0 0.0
    %194 = vmatpush1.xpose.msra.mxu0 0.0
    %195 = vmatprep.subr.mxu0 0.0
    %196 = vmatpush1.xpose.msra.mxu0 0.0
    %197 = vmatprep.subr.mxu0 0.0
    %198 = vmatpush1.xpose.msra.mxu0 0.0
    %199 = vmatprep.subr.mxu0 0.0
    %200 = vmatpush1.xpose.msra.mxu0 0.0
    %201 = vmatprep.subr.mxu0 0.0
    %202 = vmatpush1.xpose.msra.mxu0 0.0
    %203 = vmatprep.subr.mxu0 0.0
    %204 = vmatpush1.xpose.msra.mxu0 0.0
    %205 = vmatprep.mubr.f32.mxu0 0.0
    %206 = vmatmul.mubr.f32.gmra.mrb[0].mxu0 %v137
    %v207 = vpop.f32.mrb[0].mxu0
    %v208 = vadd.f32 0.0, %v207
    %v209 = vpop.f32.mrb[0].mxu0
    %210 = vdwg.mxu0
    %v211 = vsel %vm132, %v208, -1e+30
    %v212 = vsel %vm136, %v211, -inf
    %213 = vmax.xlane.f32.xlu0 %v212
    %v214 = vpop.xlane.xlu0 %213
    %v215 = vsub.f32 %v211, %v214
    %v216 = vmul.f32 %v215, 1.442695
    %v217 = vpow.pop %v216
    %v218 = vsel %vm136, %v217, 0.0
    %219 = vadd.xlane.f32.xlu0 %v218
    %v220 = vpop.xlane.xlu0 %219
    %v221 = vrcp.pop %v220
    %v222 = vmul.f32 %v217, %v221
    %223 = vrot.lane.b32.xlu0 %v120, 64
    %v224 = vpop.permute.xlu0 %223
    %v227 = vsel %vm136, %v222, 0
    %229 = vmatprep.subr.mxu0 0.0
    %230 = vmatpush1.msra.mxu0 %v224
    %231 = vmatprep.subr.mxu0 0.0
    %232 = vmatpush1.msra.mxu0 0.0
    %233 = vmatprep.subr.mxu0 0.0
    %234 = vmatpush1.msra.mxu0 0.0
    %235 = vmatprep.subr.mxu0 0.0
    %236 = vmatpush1.msra.mxu0 0.0
    %237 = vmatprep.subr.mxu0 0.0
    %238 = vmatpush1.msra.mxu0 0.0
    %239 = vmatprep.subr.mxu0 0.0
    %240 = vmatpush1.msra.mxu0 0.0
    %241 = vmatprep.subr.mxu0 0.0
    %242 = vmatpush1.msra.mxu0 0.0
    %243 = vmatprep.subr.mxu0 0.0
    %244 = vmatpush1.msra.mxu0 0.0
    %245 = vmatprep.subr.mxu0 0.0
    %246 = vmatpush1.msra.mxu0 0.0
    %247 = vmatprep.subr.mxu0 0.0
    %248 = vmatpush1.msra.mxu0 0.0
    %249 = vmatprep.subr.mxu0 0.0
    %250 = vmatpush1.msra.mxu0 0.0
    %251 = vmatprep.subr.mxu0 0.0
    %252 = vmatpush1.msra.mxu0 0.0
    %253 = vmatprep.subr.mxu0 0.0
    %254 = vmatpush1.msra.mxu0 0.0
    %255 = vmatprep.subr.mxu0 0.0
    %256 = vmatpush1.msra.mxu0 0.0
    %257 = vmatprep.subr.mxu0 0.0
    %258 = vmatpush1.msra.mxu0 0.0
    %259 = vmatprep.subr.mxu0 0.0
    %260 = vmatpush1.msra.mxu0 0.0
    %261 = vmatprep.subr.mxu0 0.0
    %262 = vmatpush1.msra.mxu0 0.0
    %263 = vmatprep.subr.mxu0 0.0
    %264 = vmatpush1.msra.mxu0 0.0
    %265 = vmatprep.subr.mxu0 0.0
    %266 = vmatpush1.msra.mxu0 0.0
    %267 = vmatprep.subr.mxu0 0.0
    %268 = vmatpush1.msra.mxu0 0.0
    %269 = vmatprep.subr.mxu0 0.0
    %270 = vmatpush1.msra.mxu0 0.0
    %271 = vmatprep.subr.mxu0 0.0
    %272 = vmatpush1.msra.mxu0 0.0
    %273 = vmatprep.subr.mxu0 0.0
    %274 = vmatpush1.msra.mxu0 0.0
    %275 = vmatprep.subr.mxu0 0.0
    %276 = vmatpush1.msra.mxu0 0.0
    %277 = vmatprep.subr.mxu0 0.0
    %278 = vmatpush1.msra.mxu0 0.0
    %279 = vmatprep.subr.mxu0 0.0
    %280 = vmatpush1.msra.mxu0 0.0
    %281 = vmatprep.subr.mxu0 0.0
    %282 = vmatpush1.msra.mxu0 0.0
    %283 = vmatprep.subr.mxu0 0.0
    %284 = vmatpush1.msra.mxu0 0.0
    %285 = vmatprep.subr.mxu0 0.0
    %286 = vmatpush1.msra.mxu0 0.0
    %287 = vmatprep.subr.mxu0 0.0
    %288 = vmatpush1.msra.mxu0 0.0
    %289 = vmatprep.subr.mxu0 0.0
    %290 = vmatpush1.msra.mxu0 0.0
    %291 = vmatprep.subr.mxu0 0.0
    %292 = vmatpush1.msra.mxu0 0.0
    %293 = vmatprep.mubr.f32.mxu0 0.0
    %294 = vmatmul.mubr.f32.gmra.mrb[0].mxu0 %v227
    %v295 = vpop.f32.mrb[0].mxu0
    %v296 = vadd.f32 0.0, %v295
    %v297 = vpop.f32.mrb[0].mxu0
    %298 = vdwg.mxu0
    %299 = vst.msk [vmem:[#allocation7] sm:$0xff] %vm136, %v296
    %300 = vrot.lane.b32.xlu0 %v120, 120
    %v301 = vpop.permute.xlu0 %300
    %302 = vrot.lane.b32.xlu0 %v120, 88
    %v303 = vpop.permute.xlu0 %302
    %v304 = vsel %vm136, %v301, 0
    %v306 = vsel %vm136, %v303, 0
    %308 = vmatprep.subr.mxu0 0.0
    %309 = vmatpush1.xpose.msra.mxu0 %v306
    %310 = vmatprep.subr.mxu0 0.0
    %311 = vmatpush1.xpose.msra.mxu0 0.0
    %312 = vmatprep.subr.mxu0 0.0
    %313 = vmatpush1.xpose.msra.mxu0 0.0
    %314 = vmatprep.subr.mxu0 0.0
    %315 = vmatpush1.xpose.msra.mxu0 0.0
    %316 = vmatprep.subr.mxu0 0.0
    %317 = vmatpush1.xpose.msra.mxu0 0.0
    %318 = vmatprep.subr.mxu0 0.0
    %319 = vmatpush1.xpose.msra.mxu0 0.0
    %320 = vmatprep.subr.mxu0 0.0
    %321 = vmatpush1.xpose.msra.mxu0 0.0
    %322 = vmatprep.subr.mxu0 0.0
    %323 = vmatpush1.xpose.msra.mxu0 0.0
    %324 = vmatprep.subr.mxu0 0.0
    %325 = vmatpush1.xpose.msra.mxu0 0.0
    %326 = vmatprep.subr.mxu0 0.0
    %327 = vmatpush1.xpose.msra.mxu0 0.0
    %328 = vmatprep.subr.mxu0 0.0
    %329 = vmatpush1.xpose.msra.mxu0 0.0
    %330 = vmatprep.subr.mxu0 0.0
    %331 = vmatpush1.xpose.msra.mxu0 0.0
    %332 = vmatprep.subr.mxu0 0.0
    %333 = vmatpush1.xpose.msra.mxu0 0.0
    %334 = vmatprep.subr.mxu0 0.0
    %335 = vmatpush1.xpose.msra.mxu0 0.0
    %336 = vmatprep.subr.mxu0 0.0
    %337 = vmatpush1.xpose.msra.mxu0 0.0
    %338 = vmatprep.subr.mxu0 0.0
    %339 = vmatpush1.xpose.msra.mxu0 0.0
    %340 = vmatprep.subr.mxu0 0.0
    %341 = vmatpush1.xpose.msra.mxu0 0.0
    %342 = vmatprep.subr.mxu0 0.0
    %343 = vmatpush1.xpose.msra.mxu0 0.0
    %344 = vmatprep.subr.mxu0 0.0
    %345 = vmatpush1.xpose.msra.mxu0 0.0
    %346 = vmatprep.subr.mxu0 0.0
    %347 = vmatpush1.xpose.msra.mxu0 0.0
    %348 = vmatprep.subr.mxu0 0.0
    %349 = vmatpush1.xpose.msra.mxu0 0.0
    %350 = vmatprep.subr.mxu0 0.0
    %351 = vmatpush1.xpose.msra.mxu0 0.0
    %352 = vmatprep.subr.mxu0 0.0
    %353 = vmatpush1.xpose.msra.mxu0 0.0
    %354 = vmatprep.subr.mxu0 0.0
    %355 = vmatpush1.xpose.msra.mxu0 0.0
    %356 = vmatprep.subr.mxu0 0.0
    %357 = vmatpush1.xpose.msra.mxu0 0.0
    %358 = vmatprep.subr.mxu0 0.0
    %359 = vmatpush1.xpose.msra.mxu0 0.0
    %360 = vmatprep.subr.mxu0 0.0
    %361 = vmatpush1.xpose.msra.mxu0 0.0
    %362 = vmatprep.subr.mxu0 0.0
    %363 = vmatpush1.xpose.msra.mxu0 0.0
    %364 = vmatprep.subr.mxu0 0.0
    %365 = vmatpush1.xpose.msra.mxu0 0.0
    %366 = vmatprep.subr.mxu0 0.0
    %367 = vmatpush1.xpose.msra.mxu0 0.0
    %368 = vmatprep.subr.mxu0 0.0
    %369 = vmatpush1.xpose.msra.mxu0 0.0
    %370 = vmatprep.subr.mxu0 0.0
    %371 = vmatpush1.xpose.msra.mxu0 0.0
    %372 = vmatprep.mubr.f32.mxu0 0.0
    %373 = vmatmul.mubr.f32.gmra.mrb[0].mxu0 %v304
    %v374 = vpop.f32.mrb[0].mxu0
    %v375 = vadd.f32 0.0, %v374
    %v376 = vpop.f32.mrb[0].mxu0
    %377 = vdwg.mxu0
    %v378 = vsel %vm132, %v375, -1e+30
    %v379 = vsel %vm136, %v378, -inf
    %380 = vmax.xlane.f32.xlu0 %v379
    %v381 = vpop.xlane.xlu0 %380
    %v382 = vsub.f32 %v378, %v381
    %v383 = vmul.f32 %v382, 1.442695
    %v384 = vpow.pop %v383
    %v385 = vsel %vm136, %v384, 0.0
    %386 = vadd.xlane.f32.xlu0 %v385
    %v387 = vpop.xlane.xlu0 %386
    %v388 = vrcp.pop %v387
    %v389 = vmul.f32 %v384, %v388
    %390 = vrot.lane.b32.xlu0 %v120, 56
    %v391 = vpop.permute.xlu0 %390
    %v394 = vsel %vm136, %v389, 0
    %396 = vmatprep.subr.mxu0 0.0
    %397 = vmatpush1.msra.mxu0 %v391
    %398 = vmatprep.subr.mxu0 0.0
    %399 = vmatpush1.msra.mxu0 0.0
    %400 = vmatprep.subr.mxu0 0.0
    %401 = vmatpush1.msra.mxu0 0.0
    %402 = vmatprep.subr.mxu0 0.0
    %403 = vmatpush1.msra.mxu0 0.0
    %404 = vmatprep.subr.mxu0 0.0
    %405 = vmatpush1.msra.mxu0 0.0
    %406 = vmatprep.subr.mxu0 0.0
    %407 = vmatpush1.msra.mxu0 0.0
    %408 = vmatprep.subr.mxu0 0.0
    %409 = vmatpush1.msra.mxu0 0.0
    %410 = vmatprep.subr.mxu0 0.0
    %411 = vmatpush1.msra.mxu0 0.0
    %412 = vmatprep.subr.mxu0 0.0
    %413 = vmatpush1.msra.mxu0 0.0
    %414 = vmatprep.subr.mxu0 0.0
    %415 = vmatpush1.msra.mxu0 0.0
    %416 = vmatprep.subr.mxu0 0.0
    %417 = vmatpush1.msra.mxu0 0.0
    %418 = vmatprep.subr.mxu0 0.0
    %419 = vmatpush1.msra.mxu0 0.0
    %420 = vmatprep.subr.mxu0 0.0
    %421 = vmatpush1.msra.mxu0 0.0
    %422 = vmatprep.subr.mxu0 0.0
    %423 = vmatpush1.msra.mxu0 0.0
    %424 = vmatprep.subr.mxu0 0.0
    %425 = vmatpush1.msra.mxu0 0.0
    %426 = vmatprep.subr.mxu0 0.0
    %427 = vmatpush1.msra.mxu0 0.0
    %428 = vmatprep.subr.mxu0 0.0
    %429 = vmatpush1.msra.mxu0 0.0
    %430 = vmatprep.subr.mxu0 0.0
    %431 = vmatpush1.msra.mxu0 0.0
    %432 = vmatprep.subr.mxu0 0.0
    %433 = vmatpush1.msra.mxu0 0.0
    %434 = vmatprep.subr.mxu0 0.0
    %435 = vmatpush1.msra.mxu0 0.0
    %436 = vmatprep.subr.mxu0 0.0
    %437 = vmatpush1.msra.mxu0 0.0
    %438 = vmatprep.subr.mxu0 0.0
    %439 = vmatpush1.msra.mxu0 0.0
    %440 = vmatprep.subr.mxu0 0.0
    %441 = vmatpush1.msra.mxu0 0.0
    %442 = vmatprep.subr.mxu0 0.0
    %443 = vmatpush1.msra.mxu0 0.0
    %444 = vmatprep.subr.mxu0 0.0
    %445 = vmatpush1.msra.mxu0 0.0
    %446 = vmatprep.subr.mxu0 0.0
    %447 = vmatpush1.msra.mxu0 0.0
    %448 = vmatprep.subr.mxu0 0.0
    %449 = vmatpush1.msra.mxu0 0.0
    %450 = vmatprep.subr.mxu0 0.0
    %451 = vmatpush1.msra.mxu0 0.0
    %452 = vmatprep.subr.mxu0 0.0
    %453 = vmatpush1.msra.mxu0 0.0
    %454 = vmatprep.subr.mxu0 0.0
    %455 = vmatpush1.msra.mxu0 0.0
    %456 = vmatprep.subr.mxu0 0.0
    %457 = vmatpush1.msra.mxu0 0.0
    %458 = vmatprep.subr.mxu0 0.0
    %459 = vmatpush1.msra.mxu0 0.0
    %460 = vmatprep.mubr.f32.mxu0 0.0
    %461 = vmatmul.mubr.f32.gmra.mrb[0].mxu0 %v394
    %v462 = vpop.f32.mrb[0].mxu0
    %v463 = vadd.f32 0.0, %v462
    %v464 = vpop.f32.mrb[0].mxu0
    %465 = vdwg.mxu0
    %467 = vrot.lane.b32.xlu0 %v463, 8
    %v468 = vpop.permute.xlu0 %467
    %vm470 = vcmask 130112
    %471 = vst.msk [vmem:[#allocation7] sm:$0xff] %vm470, %v468
    %472 = vrot.lane.b32.xlu0 %v120, 112
    %v473 = vpop.permute.xlu0 %472
    %474 = vrot.lane.b32.xlu0 %v120, 80
    %v475 = vpop.permute.xlu0 %474
    %v476 = vsel %vm136, %v473, 0
    %v478 = vsel %vm136, %v475, 0
    %480 = vmatprep.subr.mxu0 0.0
    %481 = vmatpush1.xpose.msra.mxu0 %v478
    %482 = vmatprep.subr.mxu0 0.0
    %483 = vmatpush1.xpose.msra.mxu0 0.0
    %484 = vmatprep.subr.mxu0 0.0
    %485 = vmatpush1.xpose.msra.mxu0 0.0
    %486 = vmatprep.subr.mxu0 0.0
    %487 = vmatpush1.xpose.msra.mxu0 0.0
    %488 = vmatprep.subr.mxu0 0.0
    %489 = vmatpush1.xpose.msra.mxu0 0.0
    %490 = vmatprep.subr.mxu0 0.0
    %491 = vmatpush1.xpose.msra.mxu0 0.0
    %492 = vmatprep.subr.mxu0 0.0
    %493 = vmatpush1.xpose.msra.mxu0 0.0
    %494 = vmatprep.subr.mxu0 0.0
    %495 = vmatpush1.xpose.msra.mxu0 0.0
    %496 = vmatprep.subr.mxu0 0.0
    %497 = vmatpush1.xpose.msra.mxu0 0.0
    %498 = vmatprep.subr.mxu0 0.0
    %499 = vmatpush1.xpose.msra.mxu0 0.0
    %500 = vmatprep.subr.mxu0 0.0
    %501 = vmatpush1.xpose.msra.mxu0 0.0
    %502 = vmatprep.subr.mxu0 0.0
    %503 = vmatpush1.xpose.msra.mxu0 0.0
    %504 = vmatprep.subr.mxu0 0.0
    %505 = vmatpush1.xpose.msra.mxu0 0.0
    %506 = vmatprep.subr.mxu0 0.0
    %507 = vmatpush1.xpose.msra.mxu0 0.0
    %508 = vmatprep.subr.mxu0 0.0
    %509 = vmatpush1.xpose.msra.mxu0 0.0
    %510 = vmatprep.subr.mxu0 0.0
    %511 = vmatpush1.xpose.msra.mxu0 0.0
    %512 = vmatprep.subr.mxu0 0.0
    %513 = vmatpush1.xpose.msra.mxu0 0.0
    %514 = vmatprep.subr.mxu0 0.0
    %515 = vmatpush1.xpose.msra.mxu0 0.0
    %516 = vmatprep.subr.mxu0 0.0
    %517 = vmatpush1.xpose.msra.mxu0 0.0
    %518 = vmatprep.subr.mxu0 0.0
    %519 = vmatpush1.xpose.msra.mxu0 0.0
    %520 = vmatprep.subr.mxu0 0.0
    %521 = vmatpush1.xpose.msra.mxu0 0.0
    %522 = vmatprep.subr.mxu0 0.0
    %523 = vmatpush1.xpose.msra.mxu0 0.0
    %524 = vmatprep.subr.mxu0 0.0
    %525 = vmatpush1.xpose.msra.mxu0 0.0
    %526 = vmatprep.subr.mxu0 0.0
    %527 = vmatpush1.xpose.msra.mxu0 0.0
    %528 = vmatprep.subr.mxu0 0.0
    %529 = vmatpush1.xpose.msra.mxu0 0.0
    %530 = vmatprep.subr.mxu0 0.0
    %531 = vmatpush1.xpose.msra.mxu0 0.0
    %532 = vmatprep.subr.mxu0 0.0
    %533 = vmatpush1.xpose.msra.mxu0 0.0
    %534 = vmatprep.subr.mxu0 0.0
    %535 = vmatpush1.xpose.msra.mxu0 0.0
    %536 = vmatprep.subr.mxu0 0.0
    %537 = vmatpush1.xpose.msra.mxu0 0.0
    %538 = vmatprep.subr.mxu0 0.0
    %539 = vmatpush1.xpose.msra.mxu0 0.0
    %540 = vmatprep.subr.mxu0 0.0
    %541 = vmatpush1.xpose.msra.mxu0 0.0
    %542 = vmatprep.subr.mxu0 0.0
    %543 = vmatpush1.xpose.msra.mxu0 0.0
    %544 = vmatprep.mubr.f32.mxu0 0.0
    %545 = vmatmul.mubr.f32.gmra.mrb[0].mxu0 %v476
    %v546 = vpop.f32.mrb[0].mxu0
    %v547 = vadd.f32 0.0, %v546
    %v548 = vpop.f32.mrb[0].mxu0
    %549 = vdwg.mxu0
    %v550 = vsel %vm132, %v547, -1e+30
    %v551 = vsel %vm136, %v550, -inf
    %552 = vmax.xlane.f32.xlu0 %v551
    %v553 = vpop.xlane.xlu0 %552
    %v554 = vsub.f32 %v550, %v553
    %v555 = vmul.f32 %v554, 1.442695
    %v556 = vpow.pop %v555
    %v557 = vsel %vm136, %v556, 0.0
    %558 = vadd.xlane.f32.xlu0 %v557
    %v559 = vpop.xlane.xlu0 %558
    %v560 = vrcp.pop %v559
    %v561 = vmul.f32 %v556, %v560
    %562 = vrot.lane.b32.xlu0 %v120, 48
    %v563 = vpop.permute.xlu0 %562
    %v566 = vsel %vm136, %v561, 0
    %568 = vmatprep.subr.mxu0 0.0
    %569 = vmatpush1.msra.mxu0 %v563
    %570 = vmatprep.subr.mxu0 0.0
    %571 = vmatpush1.msra.mxu0 0.0
    %572 = vmatprep.subr.mxu0 0.0
    %573 = vmatpush1.msra.mxu0 0.0
    %574 = vmatprep.subr.mxu0 0.0
    %575 = vmatpush1.msra.mxu0 0.0
    %576 = vmatprep.subr.mxu0 0.0
    %577 = vmatpush1.msra.mxu0 0.0
    %578 = vmatprep.subr.mxu0 0.0
    %579 = vmatpush1.msra.mxu0 0.0
    %580 = vmatprep.subr.mxu0 0.0
    %581 = vmatpush1.msra.mxu0 0.0
    %582 = vmatprep.subr.mxu0 0.0
    %583 = vmatpush1.msra.mxu0 0.0
    %584 = vmatprep.subr.mxu0 0.0
    %585 = vmatpush1.msra.mxu0 0.0
    %586 = vmatprep.subr.mxu0 0.0
    %587 = vmatpush1.msra.mxu0 0.0
    %588 = vmatprep.subr.mxu0 0.0
    %589 = vmatpush1.msra.mxu0 0.0
    %590 = vmatprep.subr.mxu0 0.0
    %591 = vmatpush1.msra.mxu0 0.0
    %592 = vmatprep.subr.mxu0 0.0
    %593 = vmatpush1.msra.mxu0 0.0
    %594 = vmatprep.subr.mxu0 0.0
    %595 = vmatpush1.msra.mxu0 0.0
    %596 = vmatprep.subr.mxu0 0.0
    %597 = vmatpush1.msra.mxu0 0.0
    %598 = vmatprep.subr.mxu0 0.0
    %599 = vmatpush1.msra.mxu0 0.0
    %600 = vmatprep.subr.mxu0 0.0
    %601 = vmatpush1.msra.mxu0 0.0
    %602 = vmatprep.subr.mxu0 0.0
    %603 = vmatpush1.msra.mxu0 0.0
    %604 = vmatprep.subr.mxu0 0.0
    %605 = vmatpush1.msra.mxu0 0.0
    %606 = vmatprep.subr.mxu0 0.0
    %607 = vmatpush1.msra.mxu0 0.0
    %608 = vmatprep.subr.mxu0 0.0
    %609 = vmatpush1.msra.mxu0 0.0
    %610 = vmatprep.subr.mxu0 0.0
    %611 = vmatpush1.msra.mxu0 0.0
    %612 = vmatprep.subr.mxu0 0.0
    %613 = vmatpush1.msra.mxu0 0.0
    %614 = vmatprep.subr.mxu0 0.0
    %615 = vmatpush1.msra.mxu0 0.0
    %616 = vmatprep.subr.mxu0 0.0
    %617 = vmatpush1.msra.mxu0 0.0
    %618 = vmatprep.subr.mxu0 0.0
    %619 = vmatpush1.msra.mxu0 0.0
    %620 = vmatprep.subr.mxu0 0.0
    %621 = vmatpush1.msra.mxu0 0.0
    %622 = vmatprep.subr.mxu0 0.0
    %623 = vmatpush1.msra.mxu0 0.0
    %624 = vmatprep.subr.mxu0 0.0
    %625 = vmatpush1.msra.mxu0 0.0
    %626 = vmatprep.subr.mxu0 0.0
    %627 = vmatpush1.msra.mxu0 0.0
    %628 = vmatprep.subr.mxu0 0.0
    %629 = vmatpush1.msra.mxu0 0.0
    %630 = vmatprep.subr.mxu0 0.0
    %631 = vmatpush1.msra.mxu0 0.0
    %632 = vmatprep.mubr.f32.mxu0 0.0
    %633 = vmatmul.mubr.f32.gmra.mrb[0].mxu0 %v566
    %v634 = vpop.f32.mrb[0].mxu0
    %v635 = vadd.f32 0.0, %v634
    %v636 = vpop.f32.mrb[0].mxu0
    %637 = vdwg.mxu0
    %639 = vrot.lane.b32.xlu0 %v635, 16
    %v640 = vpop.permute.xlu0 %639
    %vm642 = vcmask 195712
    %643 = vst.msk [vmem:[#allocation7] sm:$0xff] %vm642, %v640
    %644 = vrot.lane.b32.xlu0 %v120, 104
    %v645 = vpop.permute.xlu0 %644
    %646 = vrot.lane.b32.xlu0 %v120, 72
    %v647 = vpop.permute.xlu0 %646
    %v648 = vsel %vm136, %v645, 0
    %v650 = vsel %vm136, %v647, 0
    %652 = vmatprep.subr.mxu0 0.0
    %653 = vmatpush1.xpose.msra.mxu0 %v650
    %654 = vmatprep.subr.mxu0 0.0
    %655 = vmatpush1.xpose.msra.mxu0 0.0
    %656 = vmatprep.subr.mxu0 0.0
    %657 = vmatpush1.xpose.msra.mxu0 0.0
    %658 = vmatprep.subr.mxu0 0.0
    %659 = vmatpush1.xpose.msra.mxu0 0.0
    %660 = vmatprep.subr.mxu0 0.0
    %661 = vmatpush1.xpose.msra.mxu0 0.0
    %662 = vmatprep.subr.mxu0 0.0
    %663 = vmatpush1.xpose.msra.mxu0 0.0
    %664 = vmatprep.subr.mxu0 0.0
    %665 = vmatpush1.xpose.msra.mxu0 0.0
    %666 = vmatprep.subr.mxu0 0.0
    %667 = vmatpush1.xpose.msra.mxu0 0.0
    %668 = vmatprep.subr.mxu0 0.0
    %669 = vmatpush1.xpose.msra.mxu0 0.0
    %670 = vmatprep.subr.mxu0 0.0
    %671 = vmatpush1.xpose.msra.mxu0 0.0
    %672 = vmatprep.subr.mxu0 0.0
    %673 = vmatpush1.xpose.msra.mxu0 0.0
    %674 = vmatprep.subr.mxu0 0.0
    %675 = vmatpush1.xpose.msra.mxu0 0.0
    %676 = vmatprep.subr.mxu0 0.0
    %677 = vmatpush1.xpose.msra.mxu0 0.0
    %678 = vmatprep.subr.mxu0 0.0
    %679 = vmatpush1.xpose.msra.mxu0 0.0
    %680 = vmatprep.subr.mxu0 0.0
    %681 = vmatpush1.xpose.msra.mxu0 0.0
    %682 = vmatprep.subr.mxu0 0.0
    %683 = vmatpush1.xpose.msra.mxu0 0.0
    %684 = vmatprep.subr.mxu0 0.0
    %685 = vmatpush1.xpose.msra.mxu0 0.0
    %686 = vmatprep.subr.mxu0 0.0
    %687 = vmatpush1.xpose.msra.mxu0 0.0
    %688 = vmatprep.subr.mxu0 0.0
    %689 = vmatpush1.xpose.msra.mxu0 0.0
    %690 = vmatprep.subr.mxu0 0.0
    %691 = vmatpush1.xpose.msra.mxu0 0.0
    %692 = vmatprep.subr.mxu0 0.0
    %693 = vmatpush1.xpose.msra.mxu0 0.0
    %694 = vmatprep.subr.mxu0 0.0
    %695 = vmatpush1.xpose.msra.mxu0 0.0
    %696 = vmatprep.subr.mxu0 0.0
    %697 = vmatpush1.xpose.msra.mxu0 0.0
    %698 = vmatprep.subr.mxu0 0.0
    %699 = vmatpush1.xpose.msra.mxu0 0.0
    %700 = vmatprep.subr.mxu0 0.0
    %701 = vmatpush1.xpose.msra.mxu0 0.0
    %702 = vmatprep.subr.mxu0 0.0
    %703 = vmatpush1.xpose.msra.mxu0 0.0
    %704 = vmatprep.subr.mxu0 0.0
    %705 = vmatpush1.xpose.msra.mxu0 0.0
    %706 = vmatprep.subr.mxu0 0.0
    %707 = vmatpush1.xpose.msra.mxu0 0.0
    %708 = vmatprep.subr.mxu0 0.0
    %709 = vmatpush1.xpose.msra.mxu0 0.0
    %710 = vmatprep.subr.mxu0 0.0
    %711 = vmatpush1.xpose.msra.mxu0 0.0
    %712 = vmatprep.subr.mxu0 0.0
    %713 = vmatpush1.xpose.msra.mxu0 0.0
    %714 = vmatprep.subr.mxu0 0.0
    %715 = vmatpush1.xpose.msra.mxu0 0.0
    %716 = vmatprep.mubr.f32.mxu0 0.0
    %717 = vmatmul.mubr.f32.gmra.mrb[0].mxu0 %v648
    %v718 = vpop.f32.mrb[0].mxu0
    %v719 = vadd.f32 0.0, %v718
    %v720 = vpop.f32.mrb[0].mxu0
    %721 = vdwg.mxu0
    %v722 = vsel %vm132, %v719, -1e+30
    %v723 = vsel %vm136, %v722, -inf
    %724 = vmax.xlane.f32.xlu0 %v723
    %v725 = vpop.xlane.xlu0 %724
    %v726 = vsub.f32 %v722, %v725
    %v727 = vmul.f32 %v726, 1.442695
    %v728 = vpow.pop %v727
    %v729 = vsel %vm136, %v728, 0.0
    %730 = vadd.xlane.f32.xlu0 %v729
    %v731 = vpop.xlane.xlu0 %730
    %v732 = vrcp.pop %v731
    %v733 = vmul.f32 %v728, %v732
    %734 = vrot.lane.b32.xlu0 %v120, 40
    %v735 = vpop.permute.xlu0 %734
    %v738 = vsel %vm136, %v733, 0
    %740 = vmatprep.subr.mxu0 0.0
    %741 = vmatpush1.msra.mxu0 %v735
    %742 = vmatprep.subr.mxu0 0.0
    %743 = vmatpush1.msra.mxu0 0.0
    %744 = vmatprep.subr.mxu0 0.0
    %745 = vmatpush1.msra.mxu0 0.0
    %746 = vmatprep.subr.mxu0 0.0
    %747 = vmatpush1.msra.mxu0 0.0
    %748 = vmatprep.subr.mxu0 0.0
    %749 = vmatpush1.msra.mxu0 0.0
    %750 = vmatprep.subr.mxu0 0.0
    %751 = vmatpush1.msra.mxu0 0.0
    %752 = vmatprep.subr.mxu0 0.0
    %753 = vmatpush1.msra.mxu0 0.0
    %754 = vmatprep.subr.mxu0 0.0
    %755 = vmatpush1.msra.mxu0 0.0
    %756 = vmatprep.subr.mxu0 0.0
    %757 = vmatpush1.msra.mxu0 0.0
    %758 = vmatprep.subr.mxu0 0.0
    %759 = vmatpush1.msra.mxu0 0.0
    %760 = vmatprep.subr.mxu0 0.0
    %761 = vmatpush1.msra.mxu0 0.0
    %762 = vmatprep.subr.mxu0 0.0
    %763 = vmatpush1.msra.mxu0 0.0
    %764 = vmatprep.subr.mxu0 0.0
    %765 = vmatpush1.msra.mxu0 0.0
    %766 = vmatprep.subr.mxu0 0.0
    %767 = vmatpush1.msra.mxu0 0.0
    %768 = vmatprep.subr.mxu0 0.0
    %769 = vmatpush1.msra.mxu0 0.0
    %770 = vmatprep.subr.mxu0 0.0
    %771 = vmatpush1.msra.mxu0 0.0
    %772 = vmatprep.subr.mxu0 0.0
    %773 = vmatpush1.msra.mxu0 0.0
    %774 = vmatprep.subr.mxu0 0.0
    %775 = vmatpush1.msra.mxu0 0.0
    %776 = vmatprep.subr.mxu0 0.0
    %777 = vmatpush1.msra.mxu0 0.0
    %778 = vmatprep.subr.mxu0 0.0
    %779 = vmatpush1.msra.mxu0 0.0
    %780 = vmatprep.subr.mxu0 0.0
    %781 = vmatpush1.msra.mxu0 0.0
    %782 = vmatprep.subr.mxu0 0.0
    %783 = vmatpush1.msra.mxu0 0.0
    %784 = vmatprep.subr.mxu0 0.0
    %785 = vmatpush1.msra.mxu0 0.0
    %786 = vmatprep.subr.mxu0 0.0
    %787 = vmatpush1.msra.mxu0 0.0
    %788 = vmatprep.subr.mxu0 0.0
    %789 = vmatpush1.msra.mxu0 0.0
    %790 = vmatprep.subr.mxu0 0.0
    %791 = vmatpush1.msra.mxu0 0.0
    %792 = vmatprep.subr.mxu0 0.0
    %793 = vmatpush1.msra.mxu0 0.0
    %794 = vmatprep.subr.mxu0 0.0
    %795 = vmatpush1.msra.mxu0 0.0
    %796 = vmatprep.subr.mxu0 0.0
    %797 = vmatpush1.msra.mxu0 0.0
    %798 = vmatprep.subr.mxu0 0.0
    %799 = vmatpush1.msra.mxu0 0.0
    %800 = vmatprep.subr.mxu0 0.0
    %801 = vmatpush1.msra.mxu0 0.0
    %802 = vmatprep.subr.mxu0 0.0
    %803 = vmatpush1.msra.mxu0 0.0
    %804 = vmatprep.mubr.f32.mxu0 0.0
    %805 = vmatmul.mubr.f32.gmra.mrb[0].mxu0 %v738
    %v806 = vpop.f32.mrb[0].mxu0
    %v807 = vadd.f32 0.0, %v806
    %v808 = vpop.f32.mrb[0].mxu0
    %809 = vdwg.mxu0
    %811 = vrot.lane.b32.xlu0 %v807, 24
    %v812 = vpop.permute.xlu0 %811
    %vm814 = vcmask 261312
    %815 = vst.msk [vmem:[#allocation7] sm:$0xff] %vm814, %v812
    %817 = vrot.lane.b32.xlu0 %v125, 96
    %v818 = vpop.permute.xlu0 %817
    %v819 = vsel %vm136, %v125, 0
    %v821 = vsel %vm136, %v818, 0
    %823 = vmatprep.subr.mxu0 0.0
    %824 = vmatpush1.xpose.msra.mxu0 %v821
    %825 = vmatprep.subr.mxu0 0.0
    %826 = vmatpush1.xpose.msra.mxu0 0.0
    %827 = vmatprep.subr.mxu0 0.0
    %828 = vmatpush1.xpose.msra.mxu0 0.0
    %829 = vmatprep.subr.mxu0 0.0
    %830 = vmatpush1.xpose.msra.mxu0 0.0
    %831 = vmatprep.subr.mxu0 0.0
    %832 = vmatpush1.xpose.msra.mxu0 0.0
    %833 = vmatprep.subr.mxu0 0.0
    %834 = vmatpush1.xpose.msra.mxu0 0.0
    %835 = vmatprep.subr.mxu0 0.0
    %836 = vmatpush1.xpose.msra.mxu0 0.0
    %837 = vmatprep.subr.mxu0 0.0
    %838 = vmatpush1.xpose.msra.mxu0 0.0
    %839 = vmatprep.subr.mxu0 0.0
    %840 = vmatpush1.xpose.msra.mxu0 0.0
    %841 = vmatprep.subr.mxu0 0.0
    %842 = vmatpush1.xpose.msra.mxu0 0.0
    %843 = vmatprep.subr.mxu0 0.0
    %844 = vmatpush1.xpose.msra.mxu0 0.0
    %845 = vmatprep.subr.mxu0 0.0
    %846 = vmatpush1.xpose.msra.mxu0 0.0
    %847 = vmatprep.subr.mxu0 0.0
    %848 = vmatpush1.xpose.msra.mxu0 0.0
    %849 = vmatprep.subr.mxu0 0.0
    %850 = vmatpush1.xpose.msra.mxu0 0.0
    %851 = vmatprep.subr.mxu0 0.0
    %852 = vmatpush1.xpose.msra.mxu0 0.0
    %853 = vmatprep.subr.mxu0 0.0
    %854 = vmatpush1.xpose.msra.mxu0 0.0
    %855 = vmatprep.subr.mxu0 0.0
    %856 = vmatpush1.xpose.msra.mxu0 0.0
    %857 = vmatprep.subr.mxu0 0.0
    %858 = vmatpush1.xpose.msra.mxu0 0.0
    %859 = vmatprep.subr.mxu0 0.0
    %860 = vmatpush1.xpose.msra.mxu0 0.0
    %861 = vmatprep.subr.mxu0 0.0
    %862 = vmatpush1.xpose.msra.mxu0 0.0
    %863 = vmatprep.subr.mxu0 0.0
    %864 = vmatpush1.xpose.msra.mxu0 0.0
    %865 = vmatprep.subr.mxu0 0.0
    %866 = vmatpush1.xpose.msra.mxu0 0.0
    %867 = vmatprep.subr.mxu0 0.0
    %868 = vmatpush1.xpose.msra.mxu0 0.0
    %869 = vmatprep.subr.mxu0 0.0
    %870 = vmatpush1.xpose.msra.mxu0 0.0
    %871 = vmatprep.subr.mxu0 0.0
    %872 = vmatpush1.xpose.msra.mxu0 0.0
    %873 = vmatprep.subr.mxu0 0.0
    %874 = vmatpush1.xpose.msra.mxu0 0.0
    %875 = vmatprep.subr.mxu0 0.0
    %876 = vmatpush1.xpose.msra.mxu0 0.0
    %877 = vmatprep.subr.mxu0 0.0
    %878 = vmatpush1.xpose.msra.mxu0 0.0
    %879 = vmatprep.subr.mxu0 0.0
    %880 = vmatpush1.xpose.msra.mxu0 0.0
    %881 = vmatprep.subr.mxu0 0.0
    %882 = vmatpush1.xpose.msra.mxu0 0.0
    %883 = vmatprep.subr.mxu0 0.0
    %884 = vmatpush1.xpose.msra.mxu0 0.0
    %885 = vmatprep.subr.mxu0 0.0
    %886 = vmatpush1.xpose.msra.mxu0 0.0
    %887 = vmatprep.mubr.f32.mxu0 0.0
    %888 = vmatmul.mubr.f32.gmra.mrb[0].mxu0 %v819
    %v889 = vpop.f32.mrb[0].mxu0
    %v890 = vadd.f32 0.0, %v889
    %v891 = vpop.f32.mrb[0].mxu0
    %892 = vdwg.mxu0
    %v893 = vsel %vm132, %v890, -1e+30
    %v894 = vsel %vm136, %v893, -inf
    %895 = vmax.xlane.f32.xlu0 %v894
    %v896 = vpop.xlane.xlu0 %895
    %v897 = vsub.f32 %v893, %v896
    %v898 = vmul.f32 %v897, 1.442695
    %v899 = vpow.pop %v898
    %v900 = vsel %vm136, %v899, 0.0
    %901 = vadd.xlane.f32.xlu0 %v900
    %v902 = vpop.xlane.xlu0 %901
    %v903 = vrcp.pop %v902
    %v904 = vmul.f32 %v899, %v903
    %905 = vrot.lane.b32.xlu0 %v125, 64
    %v906 = vpop.permute.xlu0 %905
    %v909 = vsel %vm136, %v904, 0
    %911 = vmatprep.subr.mxu0 0.0
    %912 = vmatpush1.msra.mxu0 %v906
    %913 = vmatprep.subr.mxu0 0.0
    %914 = vmatpush1.msra.mxu0 0.0
    %915 = vmatprep.subr.mxu0 0.0
    %916 = vmatpush1.msra.mxu0 0.0
    %917 = vmatprep.subr.mxu0 0.0
    %918 = vmatpush1.msra.mxu0 0.0
    %919 = vmatprep.subr.mxu0 0.0
    %920 = vmatpush1.msra.mxu0 0.0
    %921 = vmatprep.subr.mxu0 0.0
    %922 = vmatpush1.msra.mxu0 0.0
    %923 = vmatprep.subr.mxu0 0.0
    %924 = vmatpush1.msra.mxu0 0.0
    %925 = vmatprep.subr.mxu0 0.0
    %926 = vmatpush1.msra.mxu0 0.0
    %927 = vmatprep.subr.mxu0 0.0
    %928 = vmatpush1.msra.mxu0 0.0
    %929 = vmatprep.subr.mxu0 0.0
    %930 = vmatpush1.msra.mxu0 0.0
    %931 = vmatprep.subr.mxu0 0.0
    %932 = vmatpush1.msra.mxu0 0.0
    %933 = vmatprep.subr.mxu0 0.0
    %934 = vmatpush1.msra.mxu0 0.0
    %935 = vmatprep.subr.mxu0 0.0
    %936 = vmatpush1.msra.mxu0 0.0
    %937 = vmatprep.subr.mxu0 0.0
    %938 = vmatpush1.msra.mxu0 0.0
    %939 = vmatprep.subr.mxu0 0.0
    %940 = vmatpush1.msra.mxu0 0.0
    %941 = vmatprep.subr.mxu0 0.0
    %942 = vmatpush1.msra.mxu0 0.0
    %943 = vmatprep.subr.mxu0 0.0
    %944 = vmatpush1.msra.mxu0 0.0
    %945 = vmatprep.subr.mxu0 0.0
    %946 = vmatpush1.msra.mxu0 0.0
    %947 = vmatprep.subr.mxu0 0.0
    %948 = vmatpush1.msra.mxu0 0.0
    %949 = vmatprep.subr.mxu0 0.0
    %950 = vmatpush1.msra.mxu0 0.0
    %951 = vmatprep.subr.mxu0 0.0
    %952 = vmatpush1.msra.mxu0 0.0
    %953 = vmatprep.subr.mxu0 0.0
    %954 = vmatpush1.msra.mxu0 0.0
    %955 = vmatprep.subr.mxu0 0.0
    %956 = vmatpush1.msra.mxu0 0.0
    %957 = vmatprep.subr.mxu0 0.0
    %958 = vmatpush1.msra.mxu0 0.0
    %959 = vmatprep.subr.mxu0 0.0
    %960 = vmatpush1.msra.mxu0 0.0
    %961 = vmatprep.subr.mxu0 0.0
    %962 = vmatpush1.msra.mxu0 0.0
    %963 = vmatprep.subr.mxu0 0.0
    %964 = vmatpush1.msra.mxu0 0.0
    %965 = vmatprep.subr.mxu0 0.0
    %966 = vmatpush1.msra.mxu0 0.0
    %967 = vmatprep.subr.mxu0 0.0
    %968 = vmatpush1.msra.mxu0 0.0
    %969 = vmatprep.subr.mxu0 0.0
    %970 = vmatpush1.msra.mxu0 0.0
    %971 = vmatprep.subr.mxu0 0.0
    %972 = vmatpush1.msra.mxu0 0.0
    %973 = vmatprep.subr.mxu0 0.0
    %974 = vmatpush1.msra.mxu0 0.0
    %975 = vmatprep.mubr.f32.mxu0 0.0
    %976 = vmatmul.mubr.f32.gmra.mrb[0].mxu0 %v909
    %v977 = vpop.f32.mrb[0].mxu0
    %v978 = vadd.f32 0.0, %v977
    %v979 = vpop.f32.mrb[0].mxu0
    %980 = vdwg.mxu0
    %981 = vst.msk [vmem:[#allocation7 + $0x8] sm:$0xff] %vm136, %v978
    %982 = vrot.lane.b32.xlu0 %v125, 120
    %v983 = vpop.permute.xlu0 %982
    %984 = vrot.lane.b32.xlu0 %v125, 88
    %v985 = vpop.permute.xlu0 %984
    %v986 = vsel %vm136, %v983, 0
    %v988 = vsel %vm136, %v985, 0
    %990 = vmatprep.subr.mxu0 0.0
    %991 = vmatpush1.xpose.msra.mxu0 %v988
    %992 = vmatprep.subr.mxu0 0.0
    %993 = vmatpush1.xpose.msra.mxu0 0.0
    %994 = vmatprep.subr.mxu0 0.0
    %995 = vmatpush1.xpose.msra.mxu0 0.0
    %996 = vmatprep.subr.mxu0 0.0
    %997 = vmatpush1.xpose.msra.mxu0 0.0
    %998 = vmatprep.subr.mxu0 0.0
    %999 = vmatpush1.xpose.msra.mxu0 0.0
    %1000 = vmatprep.subr.mxu0 0.0
    %1001 = vmatpush1.xpose.msra.mxu0 0.0
    %1002 = vmatprep.subr.mxu0 0.0
    %1003 = vmatpush1.xpose.msra.mxu0 0.0
    %1004 = vmatprep.subr.mxu0 0.0
    %1005 = vmatpush1.xpose.msra.mxu0 0.0
    %1006 = vmatprep.subr.mxu0 0.0
    %1007 = vmatpush1.xpose.msra.mxu0 0.0
    %1008 = vmatprep.subr.mxu0 0.0
    %1009 = vmatpush1.xpose.msra.mxu0 0.0
    %1010 = vmatprep.subr.mxu0 0.0
    %1011 = vmatpush1.xpose.msra.mxu0 0.0
    %1012 = vmatprep.subr.mxu0 0.0
    %1013 = vmatpush1.xpose.msra.mxu0 0.0
    %1014 = vmatprep.subr.mxu0 0.0
    %1015 = vmatpush1.xpose.msra.mxu0 0.0
    %1016 = vmatprep.subr.mxu0 0.0
    %1017 = vmatpush1.xpose.msra.mxu0 0.0
    %1018 = vmatprep.subr.mxu0 0.0
    %1019 = vmatpush1.xpose.msra.mxu0 0.0
    %1020 = vmatprep.subr.mxu0 0.0
    %1021 = vmatpush1.xpose.msra.mxu0 0.0
    %1022 = vmatprep.subr.mxu0 0.0
    %1023 = vmatpush1.xpose.msra.mxu0 0.0
    %1024 = vmatprep.subr.mxu0 0.0
    %1025 = vmatpush1.xpose.msra.mxu0 0.0
    %1026 = vmatprep.subr.mxu0 0.0
    %1027 = vmatpush1.xpose.msra.mxu0 0.0
    %1028 = vmatprep.subr.mxu0 0.0
    %1029 = vmatpush1.xpose.msra.mxu0 0.0
    %1030 = vmatprep.subr.mxu0 0.0
    %1031 = vmatpush1.xpose.msra.mxu0 0.0
    %1032 = vmatprep.subr.mxu0 0.0
    %1033 = vmatpush1.xpose.msra.mxu0 0.0
    %1034 = vmatprep.subr.mxu0 0.0
    %1035 = vmatpush1.xpose.msra.mxu0 0.0
    %1036 = vmatprep.subr.mxu0 0.0
    %1037 = vmatpush1.xpose.msra.mxu0 0.0
    %1038 = vmatprep.subr.mxu0 0.0
    %1039 = vmatpush1.xpose.msra.mxu0 0.0
    %1040 = vmatprep.subr.mxu0 0.0
    %1041 = vmatpush1.xpose.msra.mxu0 0.0
    %1042 = vmatprep.subr.mxu0 0.0
    %1043 = vmatpush1.xpose.msra.mxu0 0.0
    %1044 = vmatprep.subr.mxu0 0.0
    %1045 = vmatpush1.xpose.msra.mxu0 0.0
    %1046 = vmatprep.subr.mxu0 0.0
    %1047 = vmatpush1.xpose.msra.mxu0 0.0
    %1048 = vmatprep.subr.mxu0 0.0
    %1049 = vmatpush1.xpose.msra.mxu0 0.0
    %1050 = vmatprep.subr.mxu0 0.0
    %1051 = vmatpush1.xpose.msra.mxu0 0.0
    %1052 = vmatprep.subr.mxu0 0.0
    %1053 = vmatpush1.xpose.msra.mxu0 0.0
    %1054 = vmatprep.mubr.f32.mxu0 0.0
    %1055 = vmatmul.mubr.f32.gmra.mrb[0].mxu0 %v986
    %v1056 = vpop.f32.mrb[0].mxu0
    %v1057 = vadd.f32 0.0, %v1056
    %v1058 = vpop.f32.mrb[0].mxu0
    %1059 = vdwg.mxu0
    %v1060 = vsel %vm132, %v1057, -1e+30
    %v1061 = vsel %vm136, %v1060, -inf
    %1062 = vmax.xlane.f32.xlu0 %v1061
    %v1063 = vpop.xlane.xlu0 %1062
    %v1064 = vsub.f32 %v1060, %v1063
    %v1065 = vmul.f32 %v1064, 1.442695
    %v1066 = vpow.pop %v1065
    %v1067 = vsel %vm136, %v1066, 0.0
    %1068 = vadd.xlane.f32.xlu0 %v1067
    %v1069 = vpop.xlane.xlu0 %1068
    %v1070 = vrcp.pop %v1069
    %v1071 = vmul.f32 %v1066, %v1070
    %1072 = vrot.lane.b32.xlu0 %v125, 56
    %v1073 = vpop.permute.xlu0 %1072
    %v1076 = vsel %vm136, %v1071, 0
    %1078 = vmatprep.subr.mxu0 0.0
    %1079 = vmatpush1.msra.mxu0 %v1073
    %1080 = vmatprep.subr.mxu0 0.0
    %1081 = vmatpush1.msra.mxu0 0.0
    %1082 = vmatprep.subr.mxu0 0.0
    %1083 = vmatpush1.msra.mxu0 0.0
    %1084 = vmatprep.subr.mxu0 0.0
    %1085 = vmatpush1.msra.mxu0 0.0
    %1086 = vmatprep.subr.mxu0 0.0
    %1087 = vmatpush1.msra.mxu0 0.0
    %1088 = vmatprep.subr.mxu0 0.0
    %1089 = vmatpush1.msra.mxu0 0.0
    %1090 = vmatprep.subr.mxu0 0.0
    %1091 = vmatpush1.msra.mxu0 0.0
    %1092 = vmatprep.subr.mxu0 0.0
    %1093 = vmatpush1.msra.mxu0 0.0
    %1094 = vmatprep.subr.mxu0 0.0
    %1095 = vmatpush1.msra.mxu0 0.0
    %1096 = vmatprep.subr.mxu0 0.0
    %1097 = vmatpush1.msra.mxu0 0.0
    %1098 = vmatprep.subr.mxu0 0.0
    %1099 = vmatpush1.msra.mxu0 0.0
    %1100 = vmatprep.subr.mxu0 0.0
    %1101 = vmatpush1.msra.mxu0 0.0
    %1102 = vmatprep.subr.mxu0 0.0
    %1103 = vmatpush1.msra.mxu0 0.0
    %1104 = vmatprep.subr.mxu0 0.0
    %1105 = vmatpush1.msra.mxu0 0.0
    %1106 = vmatprep.subr.mxu0 0.0
    %1107 = vmatpush1.msra.mxu0 0.0
    %1108 = vmatprep.subr.mxu0 0.0
    %1109 = vmatpush1.msra.mxu0 0.0
    %1110 = vmatprep.subr.mxu0 0.0
    %1111 = vmatpush1.msra.mxu0 0.0
    %1112 = vmatprep.subr.mxu0 0.0
    %1113 = vmatpush1.msra.mxu0 0.0
    %1114 = vmatprep.subr.mxu0 0.0
    %1115 = vmatpush1.msra.mxu0 0.0
    %1116 = vmatprep.subr.mxu0 0.0
    %1117 = vmatpush1.msra.mxu0 0.0
    %1118 = vmatprep.subr.mxu0 0.0
    %1119 = vmatpush1.msra.mxu0 0.0
    %1120 = vmatprep.subr.mxu0 0.0
    %1121 = vmatpush1.msra.mxu0 0.0
    %1122 = vmatprep.subr.mxu0 0.0
    %1123 = vmatpush1.msra.mxu0 0.0
    %1124 = vmatprep.subr.mxu0 0.0
    %1125 = vmatpush1.msra.mxu0 0.0
    %1126 = vmatprep.subr.mxu0 0.0
    %1127 = vmatpush1.msra.mxu0 0.0
    %1128 = vmatprep.subr.mxu0 0.0
    %1129 = vmatpush1.msra.mxu0 0.0
    %1130 = vmatprep.subr.mxu0 0.0
    %1131 = vmatpush1.msra.mxu0 0.0
    %1132 = vmatprep.subr.mxu0 0.0
    %1133 = vmatpush1.msra.mxu0 0.0
    %1134 = vmatprep.subr.mxu0 0.0
    %1135 = vmatpush1.msra.mxu0 0.0
    %1136 = vmatprep.subr.mxu0 0.0
    %1137 = vmatpush1.msra.mxu0 0.0
    %1138 = vmatprep.subr.mxu0 0.0
    %1139 = vmatpush1.msra.mxu0 0.0
    %1140 = vmatprep.subr.mxu0 0.0
    %1141 = vmatpush1.msra.mxu0 0.0
    %1142 = vmatprep.mubr.f32.mxu0 0.0
    %1143 = vmatmul.mubr.f32.gmra.mrb[0].mxu0 %v1076
    %v1144 = vpop.f32.mrb[0].mxu0
    %v1145 = vadd.f32 0.0, %v1144
    %v1146 = vpop.f32.mrb[0].mxu0
    %1147 = vdwg.mxu0
    %1149 = vrot.lane.b32.xlu0 %v1145, 8
    %v1150 = vpop.permute.xlu0 %1149
    %1152 = vst.msk [vmem:[#allocation7 + $0x8] sm:$0xff] %vm470, %v1150
    %1153 = vrot.lane.b32.xlu0 %v125, 112
    %v1154 = vpop.permute.xlu0 %1153
    %1155 = vrot.lane.b32.xlu0 %v125, 80
    %v1156 = vpop.permute.xlu0 %1155
    %v1157 = vsel %vm136, %v1154, 0
    %v1159 = vsel %vm136, %v1156, 0
    %1161 = vmatprep.subr.mxu0 0.0
    %1162 = vmatpush1.xpose.msra.mxu0 %v1159
    %1163 = vmatprep.subr.mxu0 0.0
    %1164 = vmatpush1.xpose.msra.mxu0 0.0
    %1165 = vmatprep.subr.mxu0 0.0
    %1166 = vmatpush1.xpose.msra.mxu0 0.0
    %1167 = vmatprep.subr.mxu0 0.0
    %1168 = vmatpush1.xpose.msra.mxu0 0.0
    %1169 = vmatprep.subr.mxu0 0.0
    %1170 = vmatpush1.xpose.msra.mxu0 0.0
    %1171 = vmatprep.subr.mxu0 0.0
    %1172 = vmatpush1.xpose.msra.mxu0 0.0
    %1173 = vmatprep.subr.mxu0 0.0
    %1174 = vmatpush1.xpose.msra.mxu0 0.0
    %1175 = vmatprep.subr.mxu0 0.0
    %1176 = vmatpush1.xpose.msra.mxu0 0.0
    %1177 = vmatprep.subr.mxu0 0.0
    %1178 = vmatpush1.xpose.msra.mxu0 0.0
    %1179 = vmatprep.subr.mxu0 0.0
    %1180 = vmatpush1.xpose.msra.mxu0 0.0
    %1181 = vmatprep.subr.mxu0 0.0
    %1182 = vmatpush1.xpose.msra.mxu0 0.0
    %1183 = vmatprep.subr.mxu0 0.0
    %1184 = vmatpush1.xpose.msra.mxu0 0.0
    %1185 = vmatprep.subr.mxu0 0.0
    %1186 = vmatpush1.xpose.msra.mxu0 0.0
    %1187 = vmatprep.subr.mxu0 0.0
    %1188 = vmatpush1.xpose.msra.mxu0 0.0
    %1189 = vmatprep.subr.mxu0 0.0
    %1190 = vmatpush1.xpose.msra.mxu0 0.0
    %1191 = vmatprep.subr.mxu0 0.0
    %1192 = vmatpush1.xpose.msra.mxu0 0.0
    %1193 = vmatprep.subr.mxu0 0.0
    %1194 = vmatpush1.xpose.msra.mxu0 0.0
    %1195 = vmatprep.subr.mxu0 0.0
    %1196 = vmatpush1.xpose.msra.mxu0 0.0
    %1197 = vmatprep.subr.mxu0 0.0
    %1198 = vmatpush1.xpose.msra.mxu0 0.0
    %1199 = vmatprep.subr.mxu0 0.0
    %1200 = vmatpush1.xpose.msra.mxu0 0.0
    %1201 = vmatprep.subr.mxu0 0.0
    %1202 = vmatpush1.xpose.msra.mxu0 0.0
    %1203 = vmatprep.subr.mxu0 0.0
    %1204 = vmatpush1.xpose.msra.mxu0 0.0
    %1205 = vmatprep.subr.mxu0 0.0
    %1206 = vmatpush1.xpose.msra.mxu0 0.0
    %1207 = vmatprep.subr.mxu0 0.0
    %1208 = vmatpush1.xpose.msra.mxu0 0.0
    %1209 = vmatprep.subr.mxu0 0.0
    %1210 = vmatpush1.xpose.msra.mxu0 0.0
    %1211 = vmatprep.subr.mxu0 0.0
    %1212 = vmatpush1.xpose.msra.mxu0 0.0
    %1213 = vmatprep.subr.mxu0 0.0
    %1214 = vmatpush1.xpose.msra.mxu0 0.0
    %1215 = vmatprep.subr.mxu0 0.0
    %1216 = vmatpush1.xpose.msra.mxu0 0.0
    %1217 = vmatprep.subr.mxu0 0.0
    %1218 = vmatpush1.xpose.msra.mxu0 0.0
    %1219 = vmatprep.subr.mxu0 0.0
    %1220 = vmatpush1.xpose.msra.mxu0 0.0
    %1221 = vmatprep.subr.mxu0 0.0
    %1222 = vmatpush1.xpose.msra.mxu0 0.0
    %1223 = vmatprep.subr.mxu0 0.0
    %1224 = vmatpush1.xpose.msra.mxu0 0.0
    %1225 = vmatprep.mubr.f32.mxu0 0.0
    %1226 = vmatmul.mubr.f32.gmra.mrb[0].mxu0 %v1157
    %v1227 = vpop.f32.mrb[0].mxu0
    %v1228 = vadd.f32 0.0, %v1227
    %v1229 = vpop.f32.mrb[0].mxu0
    %1230 = vdwg.mxu0
    %v1231 = vsel %vm132, %v1228, -1e+30
    %v1232 = vsel %vm136, %v1231, -inf
    %1233 = vmax.xlane.f32.xlu0 %v1232
    %v1234 = vpop.xlane.xlu0 %1233
    %v1235 = vsub.f32 %v1231, %v1234
    %v1236 = vmul.f32 %v1235, 1.442695
    %v1237 = vpow.pop %v1236
    %v1238 = vsel %vm136, %v1237, 0.0
    %1239 = vadd.xlane.f32.xlu0 %v1238
    %v1240 = vpop.xlane.xlu0 %1239
    %v1241 = vrcp.pop %v1240
    %v1242 = vmul.f32 %v1237, %v1241
    %1243 = vrot.lane.b32.xlu0 %v125, 48
    %v1244 = vpop.permute.xlu0 %1243
    %v1247 = vsel %vm136, %v1242, 0
    %1249 = vmatprep.subr.mxu0 0.0
    %1250 = vmatpush1.msra.mxu0 %v1244
    %1251 = vmatprep.subr.mxu0 0.0
    %1252 = vmatpush1.msra.mxu0 0.0
    %1253 = vmatprep.subr.mxu0 0.0
    %1254 = vmatpush1.msra.mxu0 0.0
    %1255 = vmatprep.subr.mxu0 0.0
    %1256 = vmatpush1.msra.mxu0 0.0
    %1257 = vmatprep.subr.mxu0 0.0
    %1258 = vmatpush1.msra.mxu0 0.0
    %1259 = vmatprep.subr.mxu0 0.0
    %1260 = vmatpush1.msra.mxu0 0.0
    %1261 = vmatprep.subr.mxu0 0.0
    %1262 = vmatpush1.msra.mxu0 0.0
    %1263 = vmatprep.subr.mxu0 0.0
    %1264 = vmatpush1.msra.mxu0 0.0
    %1265 = vmatprep.subr.mxu0 0.0
    %1266 = vmatpush1.msra.mxu0 0.0
    %1267 = vmatprep.subr.mxu0 0.0
    %1268 = vmatpush1.msra.mxu0 0.0
    %1269 = vmatprep.subr.mxu0 0.0
    %1270 = vmatpush1.msra.mxu0 0.0
    %1271 = vmatprep.subr.mxu0 0.0
    %1272 = vmatpush1.msra.mxu0 0.0
    %1273 = vmatprep.subr.mxu0 0.0
    %1274 = vmatpush1.msra.mxu0 0.0
    %1275 = vmatprep.subr.mxu0 0.0
    %1276 = vmatpush1.msra.mxu0 0.0
    %1277 = vmatprep.subr.mxu0 0.0
    %1278 = vmatpush1.msra.mxu0 0.0
    %1279 = vmatprep.subr.mxu0 0.0
    %1280 = vmatpush1.msra.mxu0 0.0
    %1281 = vmatprep.subr.mxu0 0.0
    %1282 = vmatpush1.msra.mxu0 0.0
    %1283 = vmatprep.subr.mxu0 0.0
    %1284 = vmatpush1.msra.mxu0 0.0
    %1285 = vmatprep.subr.mxu0 0.0
    %1286 = vmatpush1.msra.mxu0 0.0
    %1287 = vmatprep.subr.mxu0 0.0
    %1288 = vmatpush1.msra.mxu0 0.0
    %1289 = vmatprep.subr.mxu0 0.0
    %1290 = vmatpush1.msra.mxu0 0.0
    %1291 = vmatprep.subr.mxu0 0.0
    %1292 = vmatpush1.msra.mxu0 0.0
    %1293 = vmatprep.subr.mxu0 0.0
    %1294 = vmatpush1.msra.mxu0 0.0
    %1295 = vmatprep.subr.mxu0 0.0
    %1296 = vmatpush1.msra.mxu0 0.0
    %1297 = vmatprep.subr.mxu0 0.0
    %1298 = vmatpush1.msra.mxu0 0.0
    %1299 = vmatprep.subr.mxu0 0.0
    %1300 = vmatpush1.msra.mxu0 0.0
    %1301 = vmatprep.subr.mxu0 0.0
    %1302 = vmatpush1.msra.mxu0 0.0
    %1303 = vmatprep.subr.mxu0 0.0
    %1304 = vmatpush1.msra.mxu0 0.0
    %1305 = vmatprep.subr.mxu0 0.0
    %1306 = vmatpush1.msra.mxu0 0.0
    %1307 = vmatprep.subr.mxu0 0.0
    %1308 = vmatpush1.msra.mxu0 0.0
    %1309 = vmatprep.subr.mxu0 0.0
    %1310 = vmatpush1.msra.mxu0 0.0
    %1311 = vmatprep.subr.mxu0 0.0
    %1312 = vmatpush1.msra.mxu0 0.0
    %1313 = vmatprep.mubr.f32.mxu0 0.0
    %1314 = vmatmul.mubr.f32.gmra.mrb[0].mxu0 %v1247
    %v1315 = vpop.f32.mrb[0].mxu0
    %v1316 = vadd.f32 0.0, %v1315
    %v1317 = vpop.f32.mrb[0].mxu0
    %1318 = vdwg.mxu0
    %1320 = vrot.lane.b32.xlu0 %v1316, 16
    %v1321 = vpop.permute.xlu0 %1320
    %1323 = vst.msk [vmem:[#allocation7 + $0x8] sm:$0xff] %vm642, %v1321
    %1324 = vrot.lane.b32.xlu0 %v125, 104
    %v1325 = vpop.permute.xlu0 %1324
    %1326 = vrot.lane.b32.xlu0 %v125, 72
    %v1327 = vpop.permute.xlu0 %1326
    %v1328 = vsel %vm136, %v1325, 0
    %v1330 = vsel %vm136, %v1327, 0
    %1332 = vmatprep.subr.mxu0 0.0
    %1333 = vmatpush1.xpose.msra.mxu0 %v1330
    %1334 = vmatprep.subr.mxu0 0.0
    %1335 = vmatpush1.xpose.msra.mxu0 0.0
    %1336 = vmatprep.subr.mxu0 0.0
    %1337 = vmatpush1.xpose.msra.mxu0 0.0
    %1338 = vmatprep.subr.mxu0 0.0
    %1339 = vmatpush1.xpose.msra.mxu0 0.0
    %1340 = vmatprep.subr.mxu0 0.0
    %1341 = vmatpush1.xpose.msra.mxu0 0.0
    %1342 = vmatprep.subr.mxu0 0.0
    %1343 = vmatpush1.xpose.msra.mxu0 0.0
    %1344 = vmatprep.subr.mxu0 0.0
    %1345 = vmatpush1.xpose.msra.mxu0 0.0
    %1346 = vmatprep.subr.mxu0 0.0
    %1347 = vmatpush1.xpose.msra.mxu0 0.0
    %1348 = vmatprep.subr.mxu0 0.0
    %1349 = vmatpush1.xpose.msra.mxu0 0.0
    %1350 = vmatprep.subr.mxu0 0.0
    %1351 = vmatpush1.xpose.msra.mxu0 0.0
    %1352 = vmatprep.subr.mxu0 0.0
    %1353 = vmatpush1.xpose.msra.mxu0 0.0
    %1354 = vmatprep.subr.mxu0 0.0
    %1355 = vmatpush1.xpose.msra.mxu0 0.0
    %1356 = vmatprep.subr.mxu0 0.0
    %1357 = vmatpush1.xpose.msra.mxu0 0.0
    %1358 = vmatprep.subr.mxu0 0.0
    %1359 = vmatpush1.xpose.msra.mxu0 0.0
    %1360 = vmatprep.subr.mxu0 0.0
    %1361 = vmatpush1.xpose.msra.mxu0 0.0
    %1362 = vmatprep.subr.mxu0 0.0
    %1363 = vmatpush1.xpose.msra.mxu0 0.0
    %1364 = vmatprep.subr.mxu0 0.0
    %1365 = vmatpush1.xpose.msra.mxu0 0.0
    %1366 = vmatprep.subr.mxu0 0.0
    %1367 = vmatpush1.xpose.msra.mxu0 0.0
    %1368 = vmatprep.subr.mxu0 0.0
    %1369 = vmatpush1.xpose.msra.mxu0 0.0
    %1370 = vmatprep.subr.mxu0 0.0
    %1371 = vmatpush1.xpose.msra.mxu0 0.0
    %1372 = vmatprep.subr.mxu0 0.0
    %1373 = vmatpush1.xpose.msra.mxu0 0.0
    %1374 = vmatprep.subr.mxu0 0.0
    %1375 = vmatpush1.xpose.msra.mxu0 0.0
    %1376 = vmatprep.subr.mxu0 0.0
    %1377 = vmatpush1.xpose.msra.mxu0 0.0
    %1378 = vmatprep.subr.mxu0 0.0
    %1379 = vmatpush1.xpose.msra.mxu0 0.0
    %1380 = vmatprep.subr.mxu0 0.0
    %1381 = vmatpush1.xpose.msra.mxu0 0.0
    %1382 = vmatprep.subr.mxu0 0.0
    %1383 = vmatpush1.xpose.msra.mxu0 0.0
    %1384 = vmatprep.subr.mxu0 0.0
    %1385 = vmatpush1.xpose.msra.mxu0 0.0
    %1386 = vmatprep.subr.mxu0 0.0
    %1387 = vmatpush1.xpose.msra.mxu0 0.0
    %1388 = vmatprep.subr.mxu0 0.0
    %1389 = vmatpush1.xpose.msra.mxu0 0.0
    %1390 = vmatprep.subr.mxu0 0.0
    %1391 = vmatpush1.xpose.msra.mxu0 0.0
    %1392 = vmatprep.subr.mxu0 0.0
    %1393 = vmatpush1.xpose.msra.mxu0 0.0
    %1394 = vmatprep.subr.mxu0 0.0
    %1395 = vmatpush1.xpose.msra.mxu0 0.0
    %1396 = vmatprep.mubr.f32.mxu0 0.0
    %1397 = vmatmul.mubr.f32.gmra.mrb[0].mxu0 %v1328
    %v1398 = vpop.f32.mrb[0].mxu0
    %v1399 = vadd.f32 0.0, %v1398
    %v1400 = vpop.f32.mrb[0].mxu0
    %1401 = vdwg.mxu0
    %v1402 = vsel %vm132, %v1399, -1e+30
    %v1403 = vsel %vm136, %v1402, -inf
    %1404 = vmax.xlane.f32.xlu0 %v1403
    %v1405 = vpop.xlane.xlu0 %1404
    %v1406 = vsub.f32 %v1402, %v1405
    %v1407 = vmul.f32 %v1406, 1.442695
    %v1408 = vpow.pop %v1407
    %v1409 = vsel %vm136, %v1408, 0.0
    %1410 = vadd.xlane.f32.xlu0 %v1409
    %v1411 = vpop.xlane.xlu0 %1410
    %v1412 = vrcp.pop %v1411
    %v1413 = vmul.f32 %v1408, %v1412
    %1414 = vrot.lane.b32.xlu0 %v125, 40
    %v1415 = vpop.permute.xlu0 %1414
    %v1418 = vsel %vm136, %v1413, 0
    %1420 = vmatprep.subr.mxu0 0.0
    %1421 = vmatpush1.msra.mxu0 %v1415
    %1422 = vmatprep.subr.mxu0 0.0
    %1423 = vmatpush1.msra.mxu0 0.0
    %1424 = vmatprep.subr.mxu0 0.0
    %1425 = vmatpush1.msra.mxu0 0.0
    %1426 = vmatprep.subr.mxu0 0.0
    %1427 = vmatpush1.msra.mxu0 0.0
    %1428 = vmatprep.subr.mxu0 0.0
    %1429 = vmatpush1.msra.mxu0 0.0
    %1430 = vmatprep.subr.mxu0 0.0
    %1431 = vmatpush1.msra.mxu0 0.0
    %1432 = vmatprep.subr.mxu0 0.0
    %1433 = vmatpush1.msra.mxu0 0.0
    %1434 = vmatprep.subr.mxu0 0.0
    %1435 = vmatpush1.msra.mxu0 0.0
    %1436 = vmatprep.subr.mxu0 0.0
    %1437 = vmatpush1.msra.mxu0 0.0
    %1438 = vmatprep.subr.mxu0 0.0
    %1439 = vmatpush1.msra.mxu0 0.0
    %1440 = vmatprep.subr.mxu0 0.0
    %1441 = vmatpush1.msra.mxu0 0.0
    %1442 = vmatprep.subr.mxu0 0.0
    %1443 = vmatpush1.msra.mxu0 0.0
    %1444 = vmatprep.subr.mxu0 0.0
    %1445 = vmatpush1.msra.mxu0 0.0
    %1446 = vmatprep.subr.mxu0 0.0
    %1447 = vmatpush1.msra.mxu0 0.0
    %1448 = vmatprep.subr.mxu0 0.0
    %1449 = vmatpush1.msra.mxu0 0.0
    %1450 = vmatprep.subr.mxu0 0.0
    %1451 = vmatpush1.msra.mxu0 0.0
    %1452 = vmatprep.subr.mxu0 0.0
    %1453 = vmatpush1.msra.mxu0 0.0
    %1454 = vmatprep.subr.mxu0 0.0
    %1455 = vmatpush1.msra.mxu0 0.0
    %1456 = vmatprep.subr.mxu0 0.0
    %1457 = vmatpush1.msra.mxu0 0.0
    %1458 = vmatprep.subr.mxu0 0.0
    %1459 = vmatpush1.msra.mxu0 0.0
    %1460 = vmatprep.subr.mxu0 0.0
    %1461 = vmatpush1.msra.mxu0 0.0
    %1462 = vmatprep.subr.mxu0 0.0
    %1463 = vmatpush1.msra.mxu0 0.0
    %1464 = vmatprep.subr.mxu0 0.0
    %1465 = vmatpush1.msra.mxu0 0.0
    %1466 = vmatprep.subr.mxu0 0.0
    %1467 = vmatpush1.msra.mxu0 0.0
    %1468 = vmatprep.subr.mxu0 0.0
    %1469 = vmatpush1.msra.mxu0 0.0
    %1470 = vmatprep.subr.mxu0 0.0
    %1471 = vmatpush1.msra.mxu0 0.0
    %1472 = vmatprep.subr.mxu0 0.0
    %1473 = vmatpush1.msra.mxu0 0.0
    %1474 = vmatprep.subr.mxu0 0.0
    %1475 = vmatpush1.msra.mxu0 0.0
    %1476 = vmatprep.subr.mxu0 0.0
    %1477 = vmatpush1.msra.mxu0 0.0
    %1478 = vmatprep.subr.mxu0 0.0
    %1479 = vmatpush1.msra.mxu0 0.0
    %1480 = vmatprep.subr.mxu0 0.0
    %1481 = vmatpush1.msra.mxu0 0.0
    %1482 = vmatprep.subr.mxu0 0.0
    %1483 = vmatpush1.msra.mxu0 0.0
    %1484 = vmatprep.mubr.f32.mxu0 0.0
    %1485 = vmatmul.mubr.f32.gmra.mrb[0].mxu0 %v1418
    %v1486 = vpop.f32.mrb[0].mxu0
    %v1487 = vadd.f32 0.0, %v1486
    %v1488 = vpop.f32.mrb[0].mxu0
    %1489 = vdwg.mxu0
    %1491 = vrot.lane.b32.xlu0 %v1487, 24
    %v1492 = vpop.permute.xlu0 %1491
    %1494 = vst.msk [vmem:[#allocation7 + $0x8] sm:$0xff] %vm814, %v1492
    // Predicated region
    $region18: #{multi_head_attention.1} parent=1 // pred_check
      _
    $region19: #{multi_head_attention.1} parent=1 // pred_check_branch
      %1496 = sbr.rel (0) target = $region21
    $region20: #{multi_head_attention.1} parent=1 // pred_region
      %s1498 = ssub.s32 256, 256
      %1499 = vsyncadd [#allocation4], %s1498
      %s1500 = sshll.u32 [#allocation7], 4
      %s1501 = int_to_ptr.vmem [resolvable:$true] %s1500
      %1506 = dma.vmem_to_hbm [thread:$0]  %s1501, 256, %s2, [#allocation4], 128, 128, 8
    $region21: #{multi_head_attention.1} parent=1 // pred_fallthru
      _
    // Predicated region
    $region22: #{multi_head_attention.1} parent=1 // pred_check
      _
    $region23: #{multi_head_attention.1} parent=1 // pred_check_branch
      %1508 = sbr.rel (0) target = $region25
    $region24: #{multi_head_attention.1} parent=1 // pred_region
      %1509 = dma.done [#allocation4], 256
    $region25: #{multi_head_attention.1} parent=1 // pred_fallthru
      _
    %1510 = vsyncpa [#allocation3], 1
    %1511 = vsyncpa [#allocation6], 1
    %1512 = vsyncpa [#allocation4], 1

</llo_original>
